<compile_context>
chip_gen: v7x
topology: tpu7x:2x2x1
jax: 0.10.0
libtpu: 0.0.40
codegen_flags: <defaults>
</compile_context>

<pallas_src>
import functools

import jax
import jax.numpy as jnp
import numpy as np
from jax import lax
from jax.experimental import pallas as pl
from jax.experimental.pallas import tpu as pltpu

BN_EPS = 1e-5


# ----------------------------- Pallas kernels -------------------------------

def _conv1x1_stats_kernel(x_ref, w_ref, b_ref, o_ref, sum_ref, ssq_ref,
                          *, m_total, tm):
    """(Cout,K) @ (K,tm) 1x1-conv tile + bias, plus per-channel sum / sum-sq
    accumulated across the M grid axis (feeds the following BatchNorm)."""
    i = pl.program_id(0)
    acc = jnp.dot(w_ref[...], x_ref[...], preferred_element_type=jnp.float32)
    acc = acc + b_ref[...]                       # (Cout,1) broadcast over lanes
    o_ref[...] = acc

    col = i * tm + lax.broadcasted_iota(jnp.int32, (1, tm), 1)
    valid = jnp.where(col < m_total, acc, 0.0)   # mask padded pixels from stats

    @pl.when(i == 0)
    def _():
        sum_ref[...] = jnp.zeros_like(sum_ref)
        ssq_ref[...] = jnp.zeros_like(ssq_ref)

    sum_ref[...] += jnp.sum(valid, axis=1, keepdims=True)
    ssq_ref[...] += jnp.sum(valid * valid, axis=1, keepdims=True)


def _gate_psi_kernel(x1_ref, g1_ref, s1_ref, t1_ref, s2_ref, t2_ref,
                     wpsi_ref, bpsi_ref, o_ref, sum_ref, ssq_ref,
                     *, m_total, tm):
    """Fused: BN1/BN2 apply + add + ReLU + psi 1x1 conv (Cout=1, computed on the
    VPU/XLU instead of wasting the MXU) + stats for BN3."""
    i = pl.program_id(0)
    a = (s1_ref[...] * x1_ref[...] + t1_ref[...]
         + s2_ref[...] * g1_ref[...] + t2_ref[...])
    a = jnp.maximum(a, 0.0)
    psi = jnp.sum(wpsi_ref[...] * a, axis=0, keepdims=True) + bpsi_ref[...]
    o_ref[...] = psi

    col = i * tm + lax.broadcasted_iota(jnp.int32, (1, tm), 1)
    valid = jnp.where(col < m_total, psi, 0.0)

    @pl.when(i == 0)
    def _():
        sum_ref[...] = jnp.zeros_like(sum_ref)
        ssq_ref[...] = jnp.zeros_like(ssq_ref)

    sum_ref[...] += jnp.sum(valid, axis=1, keepdims=True)
    ssq_ref[...] += jnp.sum(valid * valid, axis=1, keepdims=True)


def _att_concat_conv1_kernel(psi_ref, s3_ref, t3_ref, xskip_ref, xup_ref,
                             wa_ref, wb_ref, b_ref, o_ref, sum_ref, ssq_ref,
                             *, m_total, tm):
    """Fused: BN3 apply + sigmoid(sigmoid(.)) gate + gate*x_skip + channel
    concat with the upsampled main path expressed as a split matmul
    (conv_bn1's conv) + bias + stats for BN4."""
    i = pl.program_id(0)
    att = jax.nn.sigmoid(jax.nn.sigmoid(s3_ref[...] * psi_ref[...] + t3_ref[...]))
    x_att = att * xskip_ref[...]
    acc = jnp.dot(wa_ref[...], x_att, preferred_element_type=jnp.float32)
    acc = acc + jnp.dot(wb_ref[...], xup_ref[...],
                        preferred_element_type=jnp.float32)
    acc = acc + b_ref[...]
    o_ref[...] = acc

    col = i * tm + lax.broadcasted_iota(jnp.int32, (1, tm), 1)
    valid = jnp.where(col < m_total, acc, 0.0)

    @pl.when(i == 0)
    def _():
        sum_ref[...] = jnp.zeros_like(sum_ref)
        ssq_ref[...] = jnp.zeros_like(ssq_ref)

    sum_ref[...] += jnp.sum(valid, axis=1, keepdims=True)
    ssq_ref[...] += jnp.sum(valid * valid, axis=1, keepdims=True)


def _affine_kernel(x_ref, s_ref, t_ref, o_ref):
    """Per-channel scale/shift (final BatchNorm apply)."""
    o_ref[...] = s_ref[...] * x_ref[...] + t_ref[...]


# ---------------------------- pallas_call wrappers ---------------------------

_ARB = pltpu.CompilerParams(dimension_semantics=("arbitrary",))


def _pick_tile(m):
    """Large lane tiles (fewer grid steps), always a multiple of 128."""
    return min(1024, ((m + 127) // 128) * 128)


def _pad_lanes(a, tile):
    m = a.shape[1]
    mp = ((m + tile - 1) // tile) * tile
    return a if mp == m else jnp.pad(a, ((0, 0), (0, mp - m)))


def _finish_stats(s, ss, m_total):
    mean = s[:, 0] / m_total
    var = ss[:, 0] / m_total - mean * mean       # biased variance (PyTorch BN)
    return mean, var


def _bn_scale_shift(gamma, beta, mean, var):
    s = gamma / jnp.sqrt(var + BN_EPS)
    t = beta - mean * s
    return (s.reshape(-1, 1).astype(jnp.float32),
            t.reshape(-1, 1).astype(jnp.float32))


def conv1x1_stats(x_cm, w, b, m_total, tm):
    """x_cm: (Cin, Mp) channels-first slab; w: (Cout, Cin); b: (Cout,)."""
    cin, mp = x_cm.shape
    cout = w.shape[0]
    kernel = functools.partial(_conv1x1_stats_kernel, m_total=m_total, tm=tm)
    y, s, ss = pl.pallas_call(
        kernel,
        out_shape=(jax.ShapeDtypeStruct((cout, mp), jnp.float32),
                   jax.ShapeDtypeStruct((cout, 1), jnp.float32),
                   jax.ShapeDtypeStruct((cout, 1), jnp.float32)),
        grid=(mp // tm,),
        in_specs=[pl.BlockSpec((cin, tm), lambda i: (0, i)),
                  pl.BlockSpec((cout, cin), lambda i: (0, 0)),
                  pl.BlockSpec((cout, 1), lambda i: (0, 0))],
        out_specs=(pl.BlockSpec((cout, tm), lambda i: (0, i)),
                   pl.BlockSpec((cout, 1), lambda i: (0, 0)),
                   pl.BlockSpec((cout, 1), lambda i: (0, 0))),
        compiler_params=_ARB,
    )(x_cm, w.astype(jnp.float32), b.reshape(cout, 1).astype(jnp.float32))
    mean, var = _finish_stats(s, ss, m_total)
    return y, mean, var


def gate_psi(x1_raw, g1_raw, s1, t1, s2, t2, w_psi, b_psi, m_total, tm):
    ci, mp = x1_raw.shape
    kernel = functools.partial(_gate_psi_kernel, m_total=m_total, tm=tm)
    tile = pl.BlockSpec((ci, tm), lambda i: (0, i))
    chan_col = pl.BlockSpec((ci, 1), lambda i: (0, 0))
    y, s, ss = pl.pallas_call(
        kernel,
        out_shape=(jax.ShapeDtypeStruct((1, mp), jnp.float32),
                   jax.ShapeDtypeStruct((1, 1), jnp.float32),
                   jax.ShapeDtypeStruct((1, 1), jnp.float32)),
        grid=(mp // tm,),
        in_specs=[tile, tile, chan_col, chan_col, chan_col, chan_col,
                  pl.BlockSpec((ci, 1), lambda i: (0, 0)),
                  pl.BlockSpec((1, 1), lambda i: (0, 0))],
        out_specs=(pl.BlockSpec((1, tm), lambda i: (0, i)),
                   pl.BlockSpec((1, 1), lambda i: (0, 0)),
                   pl.BlockSpec((1, 1), lambda i: (0, 0))),
        compiler_params=_ARB,
    )(x1_raw, g1_raw, s1, t1, s2, t2,
      w_psi.astype(jnp.float32), b_psi.reshape(1, 1).astype(jnp.float32))
    mean, var = _finish_stats(s, ss, m_total)
    return y, mean, var


def att_concat_conv1(psi_raw, s3, t3, xskip_cm, xup_cm, wa, wb, b, m_total, tm):
    cx, mp = xskip_cm.shape
    cg = xup_cm.shape[0]
    cout = wa.shape[0]
    kernel = functools.partial(_att_concat_conv1_kernel, m_total=m_total, tm=tm)
    scalar = pl.BlockSpec((1, 1), lambda i: (0, 0))
    y, s, ss = pl.pallas_call(
        kernel,
        out_shape=(jax.ShapeDtypeStruct((cout, mp), jnp.float32),
                   jax.ShapeDtypeStruct((cout, 1), jnp.float32),
                   jax.ShapeDtypeStruct((cout, 1), jnp.float32)),
        grid=(mp // tm,),
        in_specs=[pl.BlockSpec((1, tm), lambda i: (0, i)),
                  scalar, scalar,
                  pl.BlockSpec((cx, tm), lambda i: (0, i)),
                  pl.BlockSpec((cg, tm), lambda i: (0, i)),
                  pl.BlockSpec((cout, cx), lambda i: (0, 0)),
                  pl.BlockSpec((cout, cg), lambda i: (0, 0)),
                  pl.BlockSpec((cout, 1), lambda i: (0, 0))],
        out_specs=(pl.BlockSpec((cout, tm), lambda i: (0, i)),
                   pl.BlockSpec((cout, 1), lambda i: (0, 0)),
                   pl.BlockSpec((cout, 1), lambda i: (0, 0))),
        compiler_params=_ARB,
    )(psi_raw, s3, t3, xskip_cm, xup_cm,
      wa.astype(jnp.float32), wb.astype(jnp.float32),
      b.reshape(cout, 1).astype(jnp.float32))
    mean, var = _finish_stats(s, ss, m_total)
    return y, mean, var


def bn_affine(x_cm, s, t, tm):
    c, mp = x_cm.shape
    return pl.pallas_call(
        _affine_kernel,
        out_shape=jax.ShapeDtypeStruct((c, mp), jnp.float32),
        grid=(mp // tm,),
        in_specs=[pl.BlockSpec((c, tm), lambda i: (0, i)),
                  pl.BlockSpec((c, 1), lambda i: (0, 0)),
                  pl.BlockSpec((c, 1), lambda i: (0, 0))],
        out_specs=pl.BlockSpec((c, tm), lambda i: (0, i)),
        compiler_params=pltpu.CompilerParams(dimension_semantics=("parallel",)),
    )(x_cm, s, t)


# --------------------------- bilinear resize (glue) ---------------------------
# TODO(synk): bilinear interpolation is a data-dependent gather; kept as pure
# JAX glue (static index/weight tables) rather than a Pallas kernel.

def _interp_coords(in_size, out_size):
    scale = in_size / out_size
    src = (jnp.arange(out_size, dtype=jnp.float32) + 0.5) * scale - 0.5
    src = jnp.maximum(src, 0.0)                  # PyTorch align_corners=False
    i0 = jnp.clip(jnp.floor(src).astype(jnp.int32), 0, in_size - 1)
    i1 = jnp.minimum(i0 + 1, in_size - 1)
    w1 = src - i0.astype(jnp.float32)
    return i0, i1, 1.0 - w1, w1


def bilinear_resize(x, out_h, out_w):
    """PyTorch-compatible F.interpolate(mode='bilinear', align_corners=False)
    over the last two dims."""
    in_h, in_w = x.shape[-2], x.shape[-1]
    if (in_h, in_w) == (out_h, out_w):
        return x
    i0h, i1h, w0h, w1h = _interp_coords(in_h, out_h)
    i0w, i1w, w0w, w1w = _interp_coords(in_w, out_w)
    rows = (jnp.take(x, i0h, axis=-2) * w0h[:, None]
            + jnp.take(x, i1h, axis=-2) * w1h[:, None])
    return jnp.take(rows, i0w, axis=-1) * w0w + jnp.take(rows, i1w, axis=-1) * w1w


# ----------------------------- parameter setup -------------------------------

def init_params(key, in_channels, out_channels):
    """Deterministic synthetic parameters matching AttentionUpBlock's shapes."""
    ci = out_channels // 2                       # int(out_channels / 2)
    ks = jax.random.split(key, 10)

    def conv(k, co, cin):
        kw, kb = jax.random.split(k)
        return (0.2 * jax.random.normal(kw, (co, cin, 1, 1), jnp.float32),
                0.1 * jax.random.normal(kb, (co,), jnp.float32))

    def bn(k, c):
        kg, kb = jax.random.split(k)
        return (1.0 + 0.1 * jax.random.normal(kg, (c,), jnp.float32),
                0.1 * jax.random.normal(kb, (c,), jnp.float32))

    wx_w, wx_b = conv(ks[0], ci, out_channels)                  # attention.Wx
    bn1_g, bn1_b = bn(ks[1], ci)
    wg_w, wg_b = conv(ks[2], ci, in_channels)                   # attention.Wg
    bn2_g, bn2_b = bn(ks[3], ci)
    psi_w, psi_b = conv(ks[4], 1, ci)                           # attention.psi
    bn3_g, bn3_b = bn(ks[5], 1)
    c1_w, c1_b = conv(ks[6], out_channels, in_channels + out_channels)  # conv_bn1
    bn4_g, bn4_b = bn(ks[7], out_channels)
    c2_w, c2_b = conv(ks[8], out_channels, out_channels)                # conv_bn2
    bn5_g, bn5_b = bn(ks[9], out_channels)

    # TODO(synk): self.upsample = ConvTranspose2d(...) is declared in the PyTorch
    # module but never used in forward(); its parameters are omitted here.
    return dict(wx_w=wx_w, wx_b=wx_b, bn1_g=bn1_g, bn1_b=bn1_b,
                wg_w=wg_w, wg_b=wg_b, bn2_g=bn2_g, bn2_b=bn2_b,
                psi_w=psi_w, psi_b=psi_b, bn3_g=bn3_g, bn3_b=bn3_b,
                c1_w=c1_w, c1_b=c1_b, bn4_g=bn4_g, bn4_b=bn4_b,
                c2_w=c2_w, c2_b=c2_b, bn5_g=bn5_g, bn5_b=bn5_b)


def _w2d(w):
    return w.reshape(w.shape[0], w.shape[1])     # (Cout,Cin,1,1) -> (Cout,Cin)


# ------------------------------ forward passes --------------------------------

def attention_up_block_forward(params, x_nchw, xskip_nchw):
    """Pallas forward of AttentionUpBlock.forward(x, x_skip)."""
    p = params
    N, cg, H, W = x_nchw.shape                   # main path ("g"), in_channels
    _, cx, Hs, Ws = xskip_nchw.shape             # skip path, out_channels
    ci = p["wx_w"].shape[0]                      # int_channels
    cout = p["c1_w"].shape[0]

    ms, mg = N * Hs * Ws, N * H * W
    tms, tmg = _pick_tile(ms), _pick_tile(mg)

    x_nchw = x_nchw.astype(jnp.float32)
    xskip_nchw = xskip_nchw.astype(jnp.float32)

    # channels-on-sublanes / pixels-on-lanes slabs (lane-dense stores).
    xskip_cm = _pad_lanes(
        jnp.transpose(xskip_nchw, (1, 0, 2, 3)).reshape(cx, ms), tms)
    x_cm = _pad_lanes(jnp.transpose(x_nchw, (1, 0, 2, 3)).reshape(cg, mg), tmg)

    # ---- AttentionBlock(x_skip, x) ----
    x1_raw, mean1, var1 = conv1x1_stats(xskip_cm, _w2d(p["wx_w"]), p["wx_b"], ms, tms)
    g_raw, mean2, var2 = conv1x1_stats(x_cm, _w2d(p["wg_w"]), p["wg_b"], mg, tmg)

    # BN2-apply commutes with bilinear resize, so resize the raw Wg output and
    # fold BN1/BN2 scale/shift into the fused gate kernel.
    g_res = bilinear_resize(g_raw[:, :mg].reshape(ci, N, H, W), Hs, Ws)
    g_res = _pad_lanes(g_res.reshape(ci, ms), tms)

    s1, t1 = _bn_scale_shift(p["bn1_g"], p["bn1_b"], mean1, var1)
    s2, t2 = _bn_scale_shift(p["bn2_g"], p["bn2_b"], mean2, var2)

    psi_raw, mean3, var3 = gate_psi(
        x1_raw, g_res, s1, t1, s2, t2,
        _w2d(p["psi_w"]).reshape(ci, 1), p["psi_b"], ms, tms)
    s3, t3 = _bn_scale_shift(p["bn3_g"], p["bn3_b"], mean3, var3)

    # ---- upsample main path + gate skip + concat + conv_bn1 (one fused kernel) ----
    x_up = bilinear_resize(jnp.transpose(x_nchw, (1, 0, 2, 3)), Hs, Ws)
    x_up = _pad_lanes(x_up.reshape(cg, ms), tms)

    c1w = _w2d(p["c1_w"])
    y1_raw, mean4, var4 = att_concat_conv1(
        psi_raw, s3, t3, xskip_cm, x_up,
        c1w[:, :cx], c1w[:, cx:], p["c1_b"], ms, tms)

    # ---- conv_bn2: fold BN4 into conv2's weights/bias; BN5 as a final affine ----
    s4, t4 = _bn_scale_shift(p["bn4_g"], p["bn4_b"], mean4, var4)
    c2w = _w2d(p["c2_w"])
    c2w_f = c2w * s4.reshape(1, -1)
    c2b_f = (c2w @ t4).reshape(-1) + p["c2_b"]
    y2_raw, mean5, var5 = conv1x1_stats(y1_raw, c2w_f, c2b_f, ms, tms)

    s5, t5 = _bn_scale_shift(p["bn5_g"], p["bn5_b"], mean5, var5)
    y2 = bn_affine(y2_raw, s5, t5, tms)

    return jnp.transpose(y2[:, :ms].reshape(cout, N, Hs, Ws), (1, 0, 2, 3))


def reference_forward(params, x, x_skip):
    """Pure-JAX reference mirroring the PyTorch module (training-mode BN)."""
    p = params

    def conv1x1(z, w, b):
        return (jnp.einsum("nchw,oc->nohw", z, _w2d(w),
                           precision=lax.Precision.HIGHEST)
                + b[None, :, None, None])

    def bn(z, gamma, beta):
        mean = jnp.mean(z, axis=(0, 2, 3), keepdims=True)
        var = jnp.mean((z - mean) ** 2, axis=(0, 2, 3), keepdims=True)
        zn = (z - mean) / jnp.sqrt(var + BN_EPS)
        return zn * gamma[None, :, None, None] + beta[None, :, None, None]

    Hs, Ws = x_skip.shape[2], x_skip.shape[3]

    # AttentionBlock.forward(x_skip, x)
    x1 = bn(conv1x1(x_skip, p["wx_w"], p["wx_b"]), p["bn1_g"], p["bn1_b"])
    g1 = bn(conv1x1(x, p["wg_w"], p["wg_b"]), p["bn2_g"], p["bn2_b"])
    g1 = bilinear_resize(g1, Hs, Ws)
    a = jnp.maximum(x1 + g1, 0.0)
    psi = bn(conv1x1(a, p["psi_w"], p["psi_b"]), p["bn3_g"], p["bn3_b"])
    att = jax.nn.sigmoid(jax.nn.sigmoid(psi))    # psi's Sigmoid + the extra one
    x_att = att * x_skip

    # AttentionUpBlock.forward
    x_up = bilinear_resize(x, Hs, Ws)
    cat = jnp.concatenate([x_att, x_up], axis=1)
    y1 = bn(conv1x1(cat, p["c1_w"], p["c1_b"]), p["bn4_g"], p["bn4_b"])
    y2 = bn(conv1x1(y1, p["c2_w"], p["c2_b"]), p["bn5_g"], p["bn5_b"])
    return y2


# ---------------------------------- main --------------------------------------

if __name__ == "__main__":
    # Small config: in_channels=16 (low-res main path), out_channels=8 (skip).
    in_channels, out_channels = 16, 8
    N, H, W = 2, 8, 8            # x:      (N, in_channels, 8, 8)
    Hs, Ws = 16, 16              # x_skip: (N, out_channels, 16, 16)

    key = jax.random.PRNGKey(0)
    kp, kx, ks = jax.random.split(key, 3)
    params = init_params(kp, in_channels, out_channels)
    x = jax.random.normal(kx, (N, in_channels, H, W), jnp.float32)
    x_skip = jax.random.normal(ks, (N, out_channels, Hs, Ws), jnp.float32)

    fwd = jax.jit(attention_up_block_forward)
    out = jax.block_until_ready(fwd(params, x, x_skip))
    assert out.shape == (N, out_channels, Hs, Ws), out.shape

    ref = reference_forward(params, x, x_skip)
    np.testing.assert_allclose(np.asarray(out), np.asarray(ref),
                               rtol=2e-3, atol=2e-3)
    print("KERNEL_OK")
</pallas_src>

<mosaic_0001>
module attributes {stable_mosaic.version = 11 : i64} {
  func.func @_conv1x1_stats_kernel(%arg0: i32, %arg1: memref<16x128xf32, #tpu.memory_space<vmem>>, %arg2: memref<4x16xf32, #tpu.memory_space<vmem>>, %arg3: memref<4x1xf32, #tpu.memory_space<vmem>>, %arg4: memref<4x128xf32, #tpu.memory_space<vmem>>, %arg5: memref<4x1xf32, #tpu.memory_space<vmem>>, %arg6: memref<4x1xf32, #tpu.memory_space<vmem>>) attributes {dimension_semantics = [#tpu.dimension_semantics<arbitrary>], iteration_bounds = array<i64: 1>, scalar_prefetch = 0 : i64, scratch_operands = 0 : i64, tpu.core_type = #tpu.core_type<tc>, window_params = [{transform_indices = @transform_0, window_bounds = array<i64: 16, 128>}, {pipeline_mode = #tpu.pipeline_mode<synchronous>, transform_indices = @transform_1, window_bounds = array<i64: 4, 16>}, {pipeline_mode = #tpu.pipeline_mode<synchronous>, transform_indices = @transform_2, window_bounds = array<i64: 4, 1>}, {transform_indices = @transform_3, window_bounds = array<i64: 4, 128>}, {pipeline_mode = #tpu.pipeline_mode<synchronous>, transform_indices = @transform_4, window_bounds = array<i64: 4, 1>}, {pipeline_mode = #tpu.pipeline_mode<synchronous>, transform_indices = @transform_5, window_bounds = array<i64: 4, 1>}]} {
    %c0 = arith.constant 0 : index
    %c0_0 = arith.constant 0 : index
    %0 = vector.load %arg2[%c0, %c0_0] : memref<4x16xf32, #tpu.memory_space<vmem>>, vector<4x16xf32>
    %c0_1 = arith.constant 0 : index
    %c0_2 = arith.constant 0 : index
    %1 = vector.load %arg1[%c0_1, %c0_2] : memref<16x128xf32, #tpu.memory_space<vmem>>, vector<16x128xf32>
    %cst = arith.constant dense<0.000000e+00> : vector<4x128xf32>
    %2 = tpu.matmul %0, %1, %cst {dimension_numbers = #tpu.dot_dimension_numbers<[1], [0], [0], [1], [0, 0, 1, 1], [], []>} : vector<4x16xf32>, vector<16x128xf32>, vector<4x128xf32> -> vector<4x128xf32>
    %c0_3 = arith.constant 0 : index
    %c0_4 = arith.constant 0 : index
    %3 = vector.load %arg3[%c0_3, %c0_4] : memref<4x1xf32, #tpu.memory_space<vmem>>, vector<4x1xf32>
    %4 = vector.broadcast %3 : vector<4x1xf32> to vector<4x128xf32>
    %5 = arith.addf %2, %4 : vector<4x128xf32>
    %c0_5 = arith.constant 0 : index
    %c0_6 = arith.constant 0 : index
    %6 = vector.load %arg4[%c0_5, %c0_6] : memref<4x128xf32, #tpu.memory_space<vmem>>, vector<4x128xf32>
    tpu.vector_store %arg4[%c0_5, %c0_6], %5 {strides = array<i32>} : memref<4x128xf32, #tpu.memory_space<vmem>>, vector<4x128xf32>,
    %c128_i32 = arith.constant 128 : i32
    %7 = arith.muli %arg0, %c128_i32 : i32
    %8 = tpu.iota {dimensions = array<i32: 1>} : vector<1x128xi32>
    %9 = vector.broadcast %7 : i32 to vector<1x128xi32>
    %10 = arith.addi %9, %8 : vector<1x128xi32>
    %c128_i32_7 = arith.constant 128 : i32
    %11 = vector.broadcast %c128_i32_7 : i32 to vector<1x128xi32>
    %12 = arith.cmpi slt, %10, %11 : vector<1x128xi32>
    %cst_8 = arith.constant 0.000000e+00 : f32
    %13 = vector.shape_cast %12 : vector<1x128xi1> to vector<1x128xi1>
    %14 = vector.broadcast %13 : vector<1x128xi1> to vector<4x128xi1>
    %15 = vector.broadcast %cst_8 : f32 to vector<4x128xf32>
    %16 = arith.select %14, %5, %15 : vector<4x128xi1>, vector<4x128xf32>
    %c0_i32 = arith.constant 0 : i32
    %17 = arith.cmpi eq, %arg0, %c0_i32 : i32
    %18 = arith.extui %17 : i1 to i32
    %c0_i32_9 = arith.constant 0 : i32
    %19 = arith.cmpi ne, %18, %c0_i32_9 : i32
    scf.if %19 {
      %cst_20 = arith.constant 0.000000e+00 : f32
      %31 = vector.broadcast %cst_20 : f32 to vector<4x1xf32>
      %c0_21 = arith.constant 0 : index
      %c0_22 = arith.constant 0 : index
      %32 = vector.load %arg5[%c0_21, %c0_22] : memref<4x1xf32, #tpu.memory_space<vmem>>, vector<4x1xf32>
      tpu.vector_store %arg5[%c0_21, %c0_22], %31 {strides = array<i32>} : memref<4x1xf32, #tpu.memory_space<vmem>>, vector<4x1xf32>,
      %cst_23 = arith.constant 0.000000e+00 : f32
      %33 = vector.broadcast %cst_23 : f32 to vector<4x1xf32>
      %c0_24 = arith.constant 0 : index
      %c0_25 = arith.constant 0 : index
      %34 = vector.load %arg6[%c0_24, %c0_25] : memref<4x1xf32, #tpu.memory_space<vmem>>, vector<4x1xf32>
      tpu.vector_store %arg6[%c0_24, %c0_25], %33 {strides = array<i32>} : memref<4x1xf32, #tpu.memory_space<vmem>>, vector<4x1xf32>,
    } else {
    }
    %c0_10 = arith.constant 0 : index
    %c0_11 = arith.constant 0 : index
    %20 = vector.load %arg5[%c0_10, %c0_11] : memref<4x1xf32, #tpu.memory_space<vmem>>, vector<4x1xf32>
    %cst_12 = arith.constant dense<0.000000e+00> : vector<4xf32>
    %21 = vector.multi_reduction <add>, %16, %cst_12 [1] : vector<4x128xf32> to vector<4xf32>
    %22 = vector.shape_cast %21 : vector<4xf32> to vector<4x1xf32>
    %23 = arith.addf %20, %22 : vector<4x1xf32>
    %c0_13 = arith.constant 0 : index
    %c0_14 = arith.constant 0 : index
    %24 = vector.load %arg5[%c0_13, %c0_14] : memref<4x1xf32, #tpu.memory_space<vmem>>, vector<4x1xf32>
    tpu.vector_store %arg5[%c0_13, %c0_14], %23 {strides = array<i32>} : memref<4x1xf32, #tpu.memory_space<vmem>>, vector<4x1xf32>,
    %c0_15 = arith.constant 0 : index
    %c0_16 = arith.constant 0 : index
    %25 = vector.load %arg6[%c0_15, %c0_16] : memref<4x1xf32, #tpu.memory_space<vmem>>, vector<4x1xf32>
    %26 = arith.mulf %16, %16 : vector<4x128xf32>
    %cst_17 = arith.constant dense<0.000000e+00> : vector<4xf32>
    %27 = vector.multi_reduction <add>, %26, %cst_17 [1] : vector<4x128xf32> to vector<4xf32>
    %28 = vector.shape_cast %27 : vector<4xf32> to vector<4x1xf32>
    %29 = arith.addf %25, %28 : vector<4x1xf32>
    %c0_18 = arith.constant 0 : index
    %c0_19 = arith.constant 0 : index
    %30 = vector.load %arg6[%c0_18, %c0_19] : memref<4x1xf32, #tpu.memory_space<vmem>>, vector<4x1xf32>
    tpu.vector_store %arg6[%c0_18, %c0_19], %29 {strides = array<i32>} : memref<4x1xf32, #tpu.memory_space<vmem>>, vector<4x1xf32>,
    return
  }
  func.func @transform_0(%arg0: i32) -> (i32, i32) {
    %c0_i32 = arith.constant 0 : i32
    %c0_i32_0 = arith.constant 0 : i32
    return %c0_i32, %arg0 : i32, i32
  }
  func.func @transform_1(%arg0: i32) -> (i32, i32) {
    %c0_i32 = arith.constant 0 : i32
    %c0_i32_0 = arith.constant 0 : i32
    %c0_i32_1 = arith.constant 0 : i32
    return %c0_i32, %c0_i32_0 : i32, i32
  }
  func.func @transform_2(%arg0: i32) -> (i32, i32) {
    %c0_i32 = arith.constant 0 : i32
    %c0_i32_0 = arith.constant 0 : i32
    %c0_i32_1 = arith.constant 0 : i32
    return %c0_i32, %c0_i32_0 : i32, i32
  }
  func.func @transform_3(%arg0: i32) -> (i32, i32) {
    %c0_i32 = arith.constant 0 : i32
    %c0_i32_0 = arith.constant 0 : i32
    return %c0_i32, %arg0 : i32, i32
  }
  func.func @transform_4(%arg0: i32) -> (i32, i32) {
    %c0_i32 = arith.constant 0 : i32
    %c0_i32_0 = arith.constant 0 : i32
    %c0_i32_1 = arith.constant 0 : i32
    return %c0_i32, %c0_i32_0 : i32, i32
  }
  func.func @transform_5(%arg0: i32) -> (i32, i32) {
    %c0_i32 = arith.constant 0 : i32
    %c0_i32_0 = arith.constant 0 : i32
    %c0_i32_1 = arith.constant 0 : i32
    return %c0_i32, %c0_i32_0 : i32, i32
  }
}

module attributes {stable_mosaic.version = 11 : i64} {
  func.func @_conv1x1_stats_kernel(%arg0: i32, %arg1: memref<8x512xf32, #tpu.memory_space<vmem>>, %arg2: memref<4x8xf32, #tpu.memory_space<vmem>>, %arg3: memref<4x1xf32, #tpu.memory_space<vmem>>, %arg4: memref<4x512xf32, #tpu.memory_space<vmem>>, %arg5: memref<4x1xf32, #tpu.memory_space<vmem>>, %arg6: memref<4x1xf32, #tpu.memory_space<vmem>>) attributes {dimension_semantics = [#tpu.dimension_semantics<arbitrary>], iteration_bounds = array<i64: 1>, scalar_prefetch = 0 : i64, scratch_operands = 0 : i64, tpu.core_type = #tpu.core_type<tc>, window_params = [{transform_indices = @transform_0, window_bounds = array<i64: 8, 512>}, {pipeline_mode = #tpu.pipeline_mode<synchronous>, transform_indices = @transform_1, window_bounds = array<i64: 4, 8>}, {pipeline_mode = #tpu.pipeline_mode<synchronous>, transform_indices = @transform_2, window_bounds = array<i64: 4, 1>}, {transform_indices = @transform_3, window_bounds = array<i64: 4, 512>}, {pipeline_mode = #tpu.pipeline_mode<synchronous>, transform_indices = @transform_4, window_bounds = array<i64: 4, 1>}, {pipeline_mode = #tpu.pipeline_mode<synchronous>, transform_indices = @transform_5, window_bounds = array<i64: 4, 1>}]} {
    %c0 = arith.constant 0 : index
    %c0_0 = arith.constant 0 : index
    %0 = vector.load %arg2[%c0, %c0_0] : memref<4x8xf32, #tpu.memory_space<vmem>>, vector<4x8xf32>
    %c0_1 = arith.constant 0 : index
    %c0_2 = arith.constant 0 : index
    %1 = vector.load %arg1[%c0_1, %c0_2] : memref<8x512xf32, #tpu.memory_space<vmem>>, vector<8x512xf32>
    %cst = arith.constant dense<0.000000e+00> : vector<4x512xf32>
    %2 = tpu.matmul %0, %1, %cst {dimension_numbers = #tpu.dot_dimension_numbers<[1], [0], [0], [1], [0, 0, 1, 1], [], []>} : vector<4x8xf32>, vector<8x512xf32>, vector<4x512xf32> -> vector<4x512xf32>
    %c0_3 = arith.constant 0 : index
    %c0_4 = arith.constant 0 : index
    %3 = vector.load %arg3[%c0_3, %c0_4] : memref<4x1xf32, #tpu.memory_space<vmem>>, vector<4x1xf32>
    %4 = vector.broadcast %3 : vector<4x1xf32> to vector<4x512xf32>
    %5 = arith.addf %2, %4 : vector<4x512xf32>
    %c0_5 = arith.constant 0 : index
    %c0_6 = arith.constant 0 : index
    %6 = vector.load %arg4[%c0_5, %c0_6] : memref<4x512xf32, #tpu.memory_space<vmem>>, vector<4x512xf32>
    tpu.vector_store %arg4[%c0_5, %c0_6], %5 {strides = array<i32>} : memref<4x512xf32, #tpu.memory_space<vmem>>, vector<4x512xf32>,
    %c512_i32 = arith.constant 512 : i32
    %7 = arith.muli %arg0, %c512_i32 : i32
    %8 = tpu.iota {dimensions = array<i32: 1>} : vector<1x512xi32>
    %9 = vector.broadcast %7 : i32 to vector<1x512xi32>
    %10 = arith.addi %9, %8 : vector<1x512xi32>
    %c512_i32_7 = arith.constant 512 : i32
    %11 = vector.broadcast %c512_i32_7 : i32 to vector<1x512xi32>
    %12 = arith.cmpi slt, %10, %11 : vector<1x512xi32>
    %cst_8 = arith.constant 0.000000e+00 : f32
    %13 = vector.shape_cast %12 : vector<1x512xi1> to vector<1x512xi1>
    %14 = vector.broadcast %13 : vector<1x512xi1> to vector<4x512xi1>
    %15 = vector.broadcast %cst_8 : f32 to vector<4x512xf32>
    %16 = arith.select %14, %5, %15 : vector<4x512xi1>, vector<4x512xf32>
    %c0_i32 = arith.constant 0 : i32
    %17 = arith.cmpi eq, %arg0, %c0_i32 : i32
    %18 = arith.extui %17 : i1 to i32
    %c0_i32_9 = arith.constant 0 : i32
    %19 = arith.cmpi ne, %18, %c0_i32_9 : i32
    scf.if %19 {
      %cst_20 = arith.constant 0.000000e+00 : f32
      %31 = vector.broadcast %cst_20 : f32 to vector<4x1xf32>
      %c0_21 = arith.constant 0 : index
      %c0_22 = arith.constant 0 : index
      %32 = vector.load %arg5[%c0_21, %c0_22] : memref<4x1xf32, #tpu.memory_space<vmem>>, vector<4x1xf32>
      tpu.vector_store %arg5[%c0_21, %c0_22], %31 {strides = array<i32>} : memref<4x1xf32, #tpu.memory_space<vmem>>, vector<4x1xf32>,
      %cst_23 = arith.constant 0.000000e+00 : f32
      %33 = vector.broadcast %cst_23 : f32 to vector<4x1xf32>
      %c0_24 = arith.constant 0 : index
      %c0_25 = arith.constant 0 : index
      %34 = vector.load %arg6[%c0_24, %c0_25] : memref<4x1xf32, #tpu.memory_space<vmem>>, vector<4x1xf32>
      tpu.vector_store %arg6[%c0_24, %c0_25], %33 {strides = array<i32>} : memref<4x1xf32, #tpu.memory_space<vmem>>, vector<4x1xf32>,
    } else {
    }
    %c0_10 = arith.constant 0 : index
    %c0_11 = arith.constant 0 : index
    %20 = vector.load %arg5[%c0_10, %c0_11] : memref<4x1xf32, #tpu.memory_space<vmem>>, vector<4x1xf32>
    %cst_12 = arith.constant dense<0.000000e+00> : vector<4xf32>
    %21 = vector.multi_reduction <add>, %16, %cst_12 [1] : vector<4x512xf32> to vector<4xf32>
    %22 = vector.shape_cast %21 : vector<4xf32> to vector<4x1xf32>
    %23 = arith.addf %20, %22 : vector<4x1xf32>
    %c0_13 = arith.constant 0 : index
    %c0_14 = arith.constant 0 : index
    %24 = vector.load %arg5[%c0_13, %c0_14] : memref<4x1xf32, #tpu.memory_space<vmem>>, vector<4x1xf32>
    tpu.vector_store %arg5[%c0_13, %c0_14], %23 {strides = array<i32>} : memref<4x1xf32, #tpu.memory_space<vmem>>, vector<4x1xf32>,
    %c0_15 = arith.constant 0 : index
    %c0_16 = arith.constant 0 : index
    %25 = vector.load %arg6[%c0_15, %c0_16] : memref<4x1xf32, #tpu.memory_space<vmem>>, vector<4x1xf32>
    %26 = arith.mulf %16, %16 : vector<4x512xf32>
    %cst_17 = arith.constant dense<0.000000e+00> : vector<4xf32>
    %27 = vector.multi_reduction <add>, %26, %cst_17 [1] : vector<4x512xf32> to vector<4xf32>
    %28 = vector.shape_cast %27 : vector<4xf32> to vector<4x1xf32>
    %29 = arith.addf %25, %28 : vector<4x1xf32>
    %c0_18 = arith.constant 0 : index
    %c0_19 = arith.constant 0 : index
    %30 = vector.load %arg6[%c0_18, %c0_19] : memref<4x1xf32, #tpu.memory_space<vmem>>, vector<4x1xf32>
    tpu.vector_store %arg6[%c0_18, %c0_19], %29 {strides = array<i32>} : memref<4x1xf32, #tpu.memory_space<vmem>>, vector<4x1xf32>,
    return
  }
  func.func @transform_0(%arg0: i32) -> (i32, i32) {
    %c0_i32 = arith.constant 0 : i32
    %c0_i32_0 = arith.constant 0 : i32
    return %c0_i32, %arg0 : i32, i32
  }
  func.func @transform_1(%arg0: i32) -> (i32, i32) {
    %c0_i32 = arith.constant 0 : i32
    %c0_i32_0 = arith.constant 0 : i32
    %c0_i32_1 = arith.constant 0 : i32
    return %c0_i32, %c0_i32_0 : i32, i32
  }
  func.func @transform_2(%arg0: i32) -> (i32, i32) {
    %c0_i32 = arith.constant 0 : i32
    %c0_i32_0 = arith.constant 0 : i32
    %c0_i32_1 = arith.constant 0 : i32
    return %c0_i32, %c0_i32_0 : i32, i32
  }
  func.func @transform_3(%arg0: i32) -> (i32, i32) {
    %c0_i32 = arith.constant 0 : i32
    %c0_i32_0 = arith.constant 0 : i32
    return %c0_i32, %arg0 : i32, i32
  }
  func.func @transform_4(%arg0: i32) -> (i32, i32) {
    %c0_i32 = arith.constant 0 : i32
    %c0_i32_0 = arith.constant 0 : i32
    %c0_i32_1 = arith.constant 0 : i32
    return %c0_i32, %c0_i32_0 : i32, i32
  }
  func.func @transform_5(%arg0: i32) -> (i32, i32) {
    %c0_i32 = arith.constant 0 : i32
    %c0_i32_0 = arith.constant 0 : i32
    %c0_i32_1 = arith.constant 0 : i32
    return %c0_i32, %c0_i32_0 : i32, i32
  }
}

module attributes {stable_mosaic.version = 11 : i64} {
  func.func @_gate_psi_kernel(%arg0: i32, %arg1: memref<4x512xf32, #tpu.memory_space<vmem>>, %arg2: memref<4x512xf32, #tpu.memory_space<vmem>>, %arg3: memref<4x1xf32, #tpu.memory_space<vmem>>, %arg4: memref<4x1xf32, #tpu.memory_space<vmem>>, %arg5: memref<4x1xf32, #tpu.memory_space<vmem>>, %arg6: memref<4x1xf32, #tpu.memory_space<vmem>>, %arg7: memref<4x1xf32, #tpu.memory_space<vmem>>, %arg8: memref<1x1xf32, #tpu.memory_space<vmem>>, %arg9: memref<1x512xf32, #tpu.memory_space<vmem>>, %arg10: memref<1x1xf32, #tpu.memory_space<vmem>>, %arg11: memref<1x1xf32, #tpu.memory_space<vmem>>) attributes {dimension_semantics = [#tpu.dimension_semantics<arbitrary>], iteration_bounds = array<i64: 1>, scalar_prefetch = 0 : i64, scratch_operands = 0 : i64, tpu.core_type = #tpu.core_type<tc>, window_params = [{transform_indices = @transform_0, window_bounds = array<i64: 4, 512>}, {transform_indices = @transform_1, window_bounds = array<i64: 4, 512>}, {pipeline_mode = #tpu.pipeline_mode<synchronous>, transform_indices = @transform_2, window_bounds = array<i64: 4, 1>}, {pipeline_mode = #tpu.pipeline_mode<synchronous>, transform_indices = @transform_3, window_bounds = array<i64: 4, 1>}, {pipeline_mode = #tpu.pipeline_mode<synchronous>, transform_indices = @transform_4, window_bounds = array<i64: 4, 1>}, {pipeline_mode = #tpu.pipeline_mode<synchronous>, transform_indices = @transform_5, window_bounds = array<i64: 4, 1>}, {pipeline_mode = #tpu.pipeline_mode<synchronous>, transform_indices = @transform_6, window_bounds = array<i64: 4, 1>}, {pipeline_mode = #tpu.pipeline_mode<synchronous>, transform_indices = @transform_7, window_bounds = array<i64: 1, 1>}, {transform_indices = @transform_8, window_bounds = array<i64: 1, 512>}, {pipeline_mode = #tpu.pipeline_mode<synchronous>, transform_indices = @transform_9, window_bounds = array<i64: 1, 1>}, {pipeline_mode = #tpu.pipeline_mode<synchronous>, transform_indices = @transform_10, window_bounds = array<i64: 1, 1>}]} {
    %c0 = arith.constant 0 : index
    %c0_0 = arith.constant 0 : index
    %0 = vector.load %arg3[%c0, %c0_0] : memref<4x1xf32, #tpu.memory_space<vmem>>, vector<4x1xf32>
    %c0_1 = arith.constant 0 : index
    %c0_2 = arith.constant 0 : index
    %1 = vector.load %arg1[%c0_1, %c0_2] : memref<4x512xf32, #tpu.memory_space<vmem>>, vector<4x512xf32>
    %2 = vector.broadcast %0 : vector<4x1xf32> to vector<4x512xf32>
    %3 = arith.mulf %2, %1 : vector<4x512xf32>
    %c0_3 = arith.constant 0 : index
    %c0_4 = arith.constant 0 : index
    %4 = vector.load %arg4[%c0_3, %c0_4] : memref<4x1xf32, #tpu.memory_space<vmem>>, vector<4x1xf32>
    %5 = vector.broadcast %4 : vector<4x1xf32> to vector<4x512xf32>
    %6 = arith.addf %3, %5 : vector<4x512xf32>
    %c0_5 = arith.constant 0 : index
    %c0_6 = arith.constant 0 : index
    %7 = vector.load %arg5[%c0_5, %c0_6] : memref<4x1xf32, #tpu.memory_space<vmem>>, vector<4x1xf32>
    %c0_7 = arith.constant 0 : index
    %c0_8 = arith.constant 0 : index
    %8 = vector.load %arg2[%c0_7, %c0_8] : memref<4x512xf32, #tpu.memory_space<vmem>>, vector<4x512xf32>
    %9 = vector.broadcast %7 : vector<4x1xf32> to vector<4x512xf32>
    %10 = arith.mulf %9, %8 : vector<4x512xf32>
    %11 = arith.addf %6, %10 : vector<4x512xf32>
    %c0_9 = arith.constant 0 : index
    %c0_10 = arith.constant 0 : index
    %12 = vector.load %arg6[%c0_9, %c0_10] : memref<4x1xf32, #tpu.memory_space<vmem>>, vector<4x1xf32>
    %13 = vector.broadcast %12 : vector<4x1xf32> to vector<4x512xf32>
    %14 = arith.addf %11, %13 : vector<4x512xf32>
    %cst = arith.constant 0.000000e+00 : f32
    %15 = vector.broadcast %cst : f32 to vector<4x512xf32>
    %16 = arith.maximumf %14, %15 : vector<4x512xf32>
    %c0_11 = arith.constant 0 : index
    %c0_12 = arith.constant 0 : index
    %17 = vector.load %arg7[%c0_11, %c0_12] : memref<4x1xf32, #tpu.memory_space<vmem>>, vector<4x1xf32>
    %18 = vector.broadcast %17 : vector<4x1xf32> to vector<4x512xf32>
    %19 = arith.mulf %18, %16 : vector<4x512xf32>
    %cst_13 = arith.constant dense<0.000000e+00> : vector<512xf32>
    %20 = vector.multi_reduction <add>, %19, %cst_13 [0] : vector<4x512xf32> to vector<512xf32>
    %21 = vector.shape_cast %20 : vector<512xf32> to vector<1x512xf32>
    %c0_14 = arith.constant 0 : index
    %c0_15 = arith.constant 0 : index
    %22 = vector.load %arg8[%c0_14, %c0_15] : memref<1x1xf32, #tpu.memory_space<vmem>>, vector<1x1xf32>
    %23 = vector.broadcast %22 : vector<1x1xf32> to vector<1x512xf32>
    %24 = arith.addf %21, %23 : vector<1x512xf32>
    %c0_16 = arith.constant 0 : index
    %c0_17 = arith.constant 0 : index
    %25 = vector.load %arg9[%c0_16, %c0_17] : memref<1x512xf32, #tpu.memory_space<vmem>>, vector<1x512xf32>
    tpu.vector_store %arg9[%c0_16, %c0_17], %24 {strides = array<i32>} : memref<1x512xf32, #tpu.memory_space<vmem>>, vector<1x512xf32>,
    %c512_i32 = arith.constant 512 : i32
    %26 = arith.muli %arg0, %c512_i32 : i32
    %27 = tpu.iota {dimensions = array<i32: 1>} : vector<1x512xi32>
    %28 = vector.broadcast %26 : i32 to vector<1x512xi32>
    %29 = arith.addi %28, %27 : vector<1x512xi32>
    %c512_i32_18 = arith.constant 512 : i32
    %30 = vector.broadcast %c512_i32_18 : i32 to vector<1x512xi32>
    %31 = arith.cmpi slt, %29, %30 : vector<1x512xi32>
    %cst_19 = arith.constant 0.000000e+00 : f32
    %32 = vector.broadcast %cst_19 : f32 to vector<1x512xf32>
    %33 = arith.select %31, %24, %32 : vector<1x512xi1>, vector<1x512xf32>
    %c0_i32 = arith.constant 0 : i32
    %34 = arith.cmpi eq, %arg0, %c0_i32 : i32
    %35 = arith.extui %34 : i1 to i32
    %c0_i32_20 = arith.constant 0 : i32
    %36 = arith.cmpi ne, %35, %c0_i32_20 : i32
    scf.if %36 {
      %cst_31 = arith.constant 0.000000e+00 : f32
      %48 = vector.broadcast %cst_31 : f32 to vector<1x1xf32>
      %c0_32 = arith.constant 0 : index
      %c0_33 = arith.constant 0 : index
      %49 = vector.load %arg10[%c0_32, %c0_33] : memref<1x1xf32, #tpu.memory_space<vmem>>, vector<1x1xf32>
      tpu.vector_store %arg10[%c0_32, %c0_33], %48 {strides = array<i32>} : memref<1x1xf32, #tpu.memory_space<vmem>>, vector<1x1xf32>,
      %cst_34 = arith.constant 0.000000e+00 : f32
      %50 = vector.broadcast %cst_34 : f32 to vector<1x1xf32>
      %c0_35 = arith.constant 0 : index
      %c0_36 = arith.constant 0 : index
      %51 = vector.load %arg11[%c0_35, %c0_36] : memref<1x1xf32, #tpu.memory_space<vmem>>, vector<1x1xf32>
      tpu.vector_store %arg11[%c0_35, %c0_36], %50 {strides = array<i32>} : memref<1x1xf32, #tpu.memory_space<vmem>>, vector<1x1xf32>,
    } else {
    }
    %c0_21 = arith.constant 0 : index
    %c0_22 = arith.constant 0 : index
    %37 = vector.load %arg10[%c0_21, %c0_22] : memref<1x1xf32, #tpu.memory_space<vmem>>, vector<1x1xf32>
    %cst_23 = arith.constant dense<0.000000e+00> : vector<1xf32>
    %38 = vector.multi_reduction <add>, %33, %cst_23 [1] : vector<1x512xf32> to vector<1xf32>
    %39 = vector.shape_cast %38 : vector<1xf32> to vector<1x1xf32>
    %40 = arith.addf %37, %39 : vector<1x1xf32>
    %c0_24 = arith.constant 0 : index
    %c0_25 = arith.constant 0 : index
    %41 = vector.load %arg10[%c0_24, %c0_25] : memref<1x1xf32, #tpu.memory_space<vmem>>, vector<1x1xf32>
    tpu.vector_store %arg10[%c0_24, %c0_25], %40 {strides = array<i32>} : memref<1x1xf32, #tpu.memory_space<vmem>>, vector<1x1xf32>,
    %c0_26 = arith.constant 0 : index
    %c0_27 = arith.constant 0 : index
    %42 = vector.load %arg11[%c0_26, %c0_27] : memref<1x1xf32, #tpu.memory_space<vmem>>, vector<1x1xf32>
    %43 = arith.mulf %33, %33 : vector<1x512xf32>
    %cst_28 = arith.constant dense<0.000000e+00> : vector<1xf32>
    %44 = vector.multi_reduction <add>, %43, %cst_28 [1] : vector<1x512xf32> to vector<1xf32>
    %45 = vector.shape_cast %44 : vector<1xf32> to vector<1x1xf32>
    %46 = arith.addf %42, %45 : vector<1x1xf32>
    %c0_29 = arith.constant 0 : index
    %c0_30 = arith.constant 0 : index
    %47 = vector.load %arg11[%c0_29, %c0_30] : memref<1x1xf32, #tpu.memory_space<vmem>>, vector<1x1xf32>
    tpu.vector_store %arg11[%c0_29, %c0_30], %46 {strides = array<i32>} : memref<1x1xf32, #tpu.memory_space<vmem>>, vector<1x1xf32>,
    return
  }
  func.func @transform_0(%arg0: i32) -> (i32, i32) {
    %c0_i32 = arith.constant 0 : i32
    %c0_i32_0 = arith.constant 0 : i32
    return %c0_i32, %arg0 : i32, i32
  }
  func.func @transform_1(%arg0: i32) -> (i32, i32) {
    %c0_i32 = arith.constant 0 : i32
    %c0_i32_0 = arith.constant 0 : i32
    return %c0_i32, %arg0 : i32, i32
  }
  func.func @transform_2(%arg0: i32) -> (i32, i32) {
    %c0_i32 = arith.constant 0 : i32
    %c0_i32_0 = arith.constant 0 : i32
    %c0_i32_1 = arith.constant 0 : i32
    return %c0_i32, %c0_i32_0 : i32, i32
  }
  func.func @transform_3(%arg0: i32) -> (i32, i32) {
    %c0_i32 = arith.constant 0 : i32
    %c0_i32_0 = arith.constant 0 : i32
    %c0_i32_1 = arith.constant 0 : i32
    return %c0_i32, %c0_i32_0 : i32, i32
  }
  func.func @transform_4(%arg0: i32) -> (i32, i32) {
    %c0_i32 = arith.constant 0 : i32
    %c0_i32_0 = arith.constant 0 : i32
    %c0_i32_1 = arith.constant 0 : i32
    return %c0_i32, %c0_i32_0 : i32, i32
  }
  func.func @transform_5(%arg0: i32) -> (i32, i32) {
    %c0_i32 = arith.constant 0 : i32
    %c0_i32_0 = arith.constant 0 : i32
    %c0_i32_1 = arith.constant 0 : i32
    return %c0_i32, %c0_i32_0 : i32, i32
  }
  func.func @transform_6(%arg0: i32) -> (i32, i32) {
    %c0_i32 = arith.constant 0 : i32
    %c0_i32_0 = arith.constant 0 : i32
    %c0_i32_1 = arith.constant 0 : i32
    return %c0_i32, %c0_i32_0 : i32, i32
  }
  func.func @transform_7(%arg0: i32) -> (i32, i32) {
    %c0_i32 = arith.constant 0 : i32
    %c0_i32_0 = arith.constant 0 : i32
    %c0_i32_1 = arith.constant 0 : i32
    return %c0_i32, %c0_i32_0 : i32, i32
  }
  func.func @transform_8(%arg0: i32) -> (i32, i32) {
    %c0_i32 = arith.constant 0 : i32
    %c0_i32_0 = arith.constant 0 : i32
    return %c0_i32, %arg0 : i32, i32
  }
  func.func @transform_9(%arg0: i32) -> (i32, i32) {
    %c0_i32 = arith.constant 0 : i32
    %c0_i32_0 = arith.constant 0 : i32
    %c0_i32_1 = arith.constant 0 : i32
    return %c0_i32, %c0_i32_0 : i32, i32
  }
  func.func @transform_10(%arg0: i32) -> (i32, i32) {
    %c0_i32 = arith.constant 0 : i32
    %c0_i32_0 = arith.constant 0 : i32
    %c0_i32_1 = arith.constant 0 : i32
    return %c0_i32, %c0_i32_0 : i32, i32
  }
}

module attributes {stable_mosaic.version = 11 : i64} {
  func.func @_affine_kernel(%arg0: i32, %arg1: memref<8x512xf32, #tpu.memory_space<vmem>>, %arg2: memref<8x1xf32, #tpu.memory_space<vmem>>, %arg3: memref<8x1xf32, #tpu.memory_space<vmem>>, %arg4: memref<8x512xf32, #tpu.memory_space<vmem>>) attributes {dimension_semantics = [#tpu.dimension_semantics<parallel>], iteration_bounds = array<i64: 1>, scalar_prefetch = 0 : i64, scratch_operands = 0 : i64, tpu.core_type = #tpu.core_type<tc>, window_params = [{transform_indices = @transform_0, window_bounds = array<i64: 8, 512>}, {pipeline_mode = #tpu.pipeline_mode<synchronous>, transform_indices = @transform_1, window_bounds = array<i64: 8, 1>}, {pipeline_mode = #tpu.pipeline_mode<synchronous>, transform_indices = @transform_2, window_bounds = array<i64: 8, 1>}, {transform_indices = @transform_3, window_bounds = array<i64: 8, 512>}]} {
    %c0 = arith.constant 0 : index
    %c0_0 = arith.constant 0 : index
    %0 = vector.load %arg2[%c0, %c0_0] : memref<8x1xf32, #tpu.memory_space<vmem>>, vector<8x1xf32>
    %c0_1 = arith.constant 0 : index
    %c0_2 = arith.constant 0 : index
    %1 = vector.load %arg1[%c0_1, %c0_2] : memref<8x512xf32, #tpu.memory_space<vmem>>, vector<8x512xf32>
    %2 = vector.broadcast %0 : vector<8x1xf32> to vector<8x512xf32>
    %3 = arith.mulf %2, %1 : vector<8x512xf32>
    %c0_3 = arith.constant 0 : index
    %c0_4 = arith.constant 0 : index
    %4 = vector.load %arg3[%c0_3, %c0_4] : memref<8x1xf32, #tpu.memory_space<vmem>>, vector<8x1xf32>
    %5 = vector.broadcast %4 : vector<8x1xf32> to vector<8x512xf32>
    %6 = arith.addf %3, %5 : vector<8x512xf32>
    %c0_5 = arith.constant 0 : index
    %c0_6 = arith.constant 0 : index
    %7 = vector.load %arg4[%c0_5, %c0_6] : memref<8x512xf32, #tpu.memory_space<vmem>>, vector<8x512xf32>
    tpu.vector_store %arg4[%c0_5, %c0_6], %6 {strides = array<i32>} : memref<8x512xf32, #tpu.memory_space<vmem>>, vector<8x512xf32>,
    return
  }
  func.func @transform_0(%arg0: i32) -> (i32, i32) {
    %c0_i32 = arith.constant 0 : i32
    %c0_i32_0 = arith.constant 0 : i32
    return %c0_i32, %arg0 : i32, i32
  }
  func.func @transform_1(%arg0: i32) -> (i32, i32) {
    %c0_i32 = arith.constant 0 : i32
    %c0_i32_0 = arith.constant 0 : i32
    %c0_i32_1 = arith.constant 0 : i32
    return %c0_i32, %c0_i32_0 : i32, i32
  }
  func.func @transform_2(%arg0: i32) -> (i32, i32) {
    %c0_i32 = arith.constant 0 : i32
    %c0_i32_0 = arith.constant 0 : i32
    %c0_i32_1 = arith.constant 0 : i32
    return %c0_i32, %c0_i32_0 : i32, i32
  }
  func.func @transform_3(%arg0: i32) -> (i32, i32) {
    %c0_i32 = arith.constant 0 : i32
    %c0_i32_0 = arith.constant 0 : i32
    return %c0_i32, %arg0 : i32, i32
  }
}

module attributes {stable_mosaic.version = 11 : i64} {
  func.func @_conv1x1_stats_kernel(%arg0: i32, %arg1: memref<8x512xf32, #tpu.memory_space<vmem>>, %arg2: memref<8x8xf32, #tpu.memory_space<vmem>>, %arg3: memref<8x1xf32, #tpu.memory_space<vmem>>, %arg4: memref<8x512xf32, #tpu.memory_space<vmem>>, %arg5: memref<8x1xf32, #tpu.memory_space<vmem>>, %arg6: memref<8x1xf32, #tpu.memory_space<vmem>>) attributes {dimension_semantics = [#tpu.dimension_semantics<arbitrary>], iteration_bounds = array<i64: 1>, scalar_prefetch = 0 : i64, scratch_operands = 0 : i64, tpu.core_type = #tpu.core_type<tc>, window_params = [{transform_indices = @transform_0, window_bounds = array<i64: 8, 512>}, {pipeline_mode = #tpu.pipeline_mode<synchronous>, transform_indices = @transform_1, window_bounds = array<i64: 8, 8>}, {pipeline_mode = #tpu.pipeline_mode<synchronous>, transform_indices = @transform_2, window_bounds = array<i64: 8, 1>}, {transform_indices = @transform_3, window_bounds = array<i64: 8, 512>}, {pipeline_mode = #tpu.pipeline_mode<synchronous>, transform_indices = @transform_4, window_bounds = array<i64: 8, 1>}, {pipeline_mode = #tpu.pipeline_mode<synchronous>, transform_indices = @transform_5, window_bounds = array<i64: 8, 1>}]} {
    %c0 = arith.constant 0 : index
    %c0_0 = arith.constant 0 : index
    %0 = vector.load %arg2[%c0, %c0_0] : memref<8x8xf32, #tpu.memory_space<vmem>>, vector<8x8xf32>
    %c0_1 = arith.constant 0 : index
    %c0_2 = arith.constant 0 : index
    %1 = vector.load %arg1[%c0_1, %c0_2] : memref<8x512xf32, #tpu.memory_space<vmem>>, vector<8x512xf32>
    %cst = arith.constant dense<0.000000e+00> : vector<8x512xf32>
    %2 = tpu.matmul %0, %1, %cst {dimension_numbers = #tpu.dot_dimension_numbers<[1], [0], [0], [1], [0, 0, 1, 1], [], []>} : vector<8x8xf32>, vector<8x512xf32>, vector<8x512xf32> -> vector<8x512xf32>
    %c0_3 = arith.constant 0 : index
    %c0_4 = arith.constant 0 : index
    %3 = vector.load %arg3[%c0_3, %c0_4] : memref<8x1xf32, #tpu.memory_space<vmem>>, vector<8x1xf32>
    %4 = vector.broadcast %3 : vector<8x1xf32> to vector<8x512xf32>
    %5 = arith.addf %2, %4 : vector<8x512xf32>
    %c0_5 = arith.constant 0 : index
    %c0_6 = arith.constant 0 : index
    %6 = vector.load %arg4[%c0_5, %c0_6] : memref<8x512xf32, #tpu.memory_space<vmem>>, vector<8x512xf32>
    tpu.vector_store %arg4[%c0_5, %c0_6], %5 {strides = array<i32>} : memref<8x512xf32, #tpu.memory_space<vmem>>, vector<8x512xf32>,
    %c512_i32 = arith.constant 512 : i32
    %7 = arith.muli %arg0, %c512_i32 : i32
    %8 = tpu.iota {dimensions = array<i32: 1>} : vector<1x512xi32>
    %9 = vector.broadcast %7 : i32 to vector<1x512xi32>
    %10 = arith.addi %9, %8 : vector<1x512xi32>
    %c512_i32_7 = arith.constant 512 : i32
    %11 = vector.broadcast %c512_i32_7 : i32 to vector<1x512xi32>
    %12 = arith.cmpi slt, %10, %11 : vector<1x512xi32>
    %cst_8 = arith.constant 0.000000e+00 : f32
    %13 = vector.shape_cast %12 : vector<1x512xi1> to vector<1x512xi1>
    %14 = vector.broadcast %13 : vector<1x512xi1> to vector<8x512xi1>
    %15 = vector.broadcast %cst_8 : f32 to vector<8x512xf32>
    %16 = arith.select %14, %5, %15 : vector<8x512xi1>, vector<8x512xf32>
    %c0_i32 = arith.constant 0 : i32
    %17 = arith.cmpi eq, %arg0, %c0_i32 : i32
    %18 = arith.extui %17 : i1 to i32
    %c0_i32_9 = arith.constant 0 : i32
    %19 = arith.cmpi ne, %18, %c0_i32_9 : i32
    scf.if %19 {
      %cst_20 = arith.constant 0.000000e+00 : f32
      %31 = vector.broadcast %cst_20 : f32 to vector<8x1xf32>
      %c0_21 = arith.constant 0 : index
      %c0_22 = arith.constant 0 : index
      %32 = vector.load %arg5[%c0_21, %c0_22] : memref<8x1xf32, #tpu.memory_space<vmem>>, vector<8x1xf32>
      tpu.vector_store %arg5[%c0_21, %c0_22], %31 {strides = array<i32>} : memref<8x1xf32, #tpu.memory_space<vmem>>, vector<8x1xf32>,
      %cst_23 = arith.constant 0.000000e+00 : f32
      %33 = vector.broadcast %cst_23 : f32 to vector<8x1xf32>
      %c0_24 = arith.constant 0 : index
      %c0_25 = arith.constant 0 : index
      %34 = vector.load %arg6[%c0_24, %c0_25] : memref<8x1xf32, #tpu.memory_space<vmem>>, vector<8x1xf32>
      tpu.vector_store %arg6[%c0_24, %c0_25], %33 {strides = array<i32>} : memref<8x1xf32, #tpu.memory_space<vmem>>, vector<8x1xf32>,
    } else {
    }
    %c0_10 = arith.constant 0 : index
    %c0_11 = arith.constant 0 : index
    %20 = vector.load %arg5[%c0_10, %c0_11] : memref<8x1xf32, #tpu.memory_space<vmem>>, vector<8x1xf32>
    %cst_12 = arith.constant dense<0.000000e+00> : vector<8xf32>
    %21 = vector.multi_reduction <add>, %16, %cst_12 [1] : vector<8x512xf32> to vector<8xf32>
    %22 = vector.shape_cast %21 : vector<8xf32> to vector<8x1xf32>
    %23 = arith.addf %20, %22 : vector<8x1xf32>
    %c0_13 = arith.constant 0 : index
    %c0_14 = arith.constant 0 : index
    %24 = vector.load %arg5[%c0_13, %c0_14] : memref<8x1xf32, #tpu.memory_space<vmem>>, vector<8x1xf32>
    tpu.vector_store %arg5[%c0_13, %c0_14], %23 {strides = array<i32>} : memref<8x1xf32, #tpu.memory_space<vmem>>, vector<8x1xf32>,
    %c0_15 = arith.constant 0 : index
    %c0_16 = arith.constant 0 : index
    %25 = vector.load %arg6[%c0_15, %c0_16] : memref<8x1xf32, #tpu.memory_space<vmem>>, vector<8x1xf32>
    %26 = arith.mulf %16, %16 : vector<8x512xf32>
    %cst_17 = arith.constant dense<0.000000e+00> : vector<8xf32>
    %27 = vector.multi_reduction <add>, %26, %cst_17 [1] : vector<8x512xf32> to vector<8xf32>
    %28 = vector.shape_cast %27 : vector<8xf32> to vector<8x1xf32>
    %29 = arith.addf %25, %28 : vector<8x1xf32>
    %c0_18 = arith.constant 0 : index
    %c0_19 = arith.constant 0 : index
    %30 = vector.load %arg6[%c0_18, %c0_19] : memref<8x1xf32, #tpu.memory_space<vmem>>, vector<8x1xf32>
    tpu.vector_store %arg6[%c0_18, %c0_19], %29 {strides = array<i32>} : memref<8x1xf32, #tpu.memory_space<vmem>>, vector<8x1xf32>,
    return
  }
  func.func @transform_0(%arg0: i32) -> (i32, i32) {
    %c0_i32 = arith.constant 0 : i32
    %c0_i32_0 = arith.constant 0 : i32
    return %c0_i32, %arg0 : i32, i32
  }
  func.func @transform_1(%arg0: i32) -> (i32, i32) {
    %c0_i32 = arith.constant 0 : i32
    %c0_i32_0 = arith.constant 0 : i32
    %c0_i32_1 = arith.constant 0 : i32
    return %c0_i32, %c0_i32_0 : i32, i32
  }
  func.func @transform_2(%arg0: i32) -> (i32, i32) {
    %c0_i32 = arith.constant 0 : i32
    %c0_i32_0 = arith.constant 0 : i32
    %c0_i32_1 = arith.constant 0 : i32
    return %c0_i32, %c0_i32_0 : i32, i32
  }
  func.func @transform_3(%arg0: i32) -> (i32, i32) {
    %c0_i32 = arith.constant 0 : i32
    %c0_i32_0 = arith.constant 0 : i32
    return %c0_i32, %arg0 : i32, i32
  }
  func.func @transform_4(%arg0: i32) -> (i32, i32) {
    %c0_i32 = arith.constant 0 : i32
    %c0_i32_0 = arith.constant 0 : i32
    %c0_i32_1 = arith.constant 0 : i32
    return %c0_i32, %c0_i32_0 : i32, i32
  }
  func.func @transform_5(%arg0: i32) -> (i32, i32) {
    %c0_i32 = arith.constant 0 : i32
    %c0_i32_0 = arith.constant 0 : i32
    %c0_i32_1 = arith.constant 0 : i32
    return %c0_i32, %c0_i32_0 : i32, i32
  }
}

module attributes {stable_mosaic.version = 11 : i64} {
  func.func @_att_concat_conv1_kernel(%arg0: i32, %arg1: memref<1x512xf32, #tpu.memory_space<vmem>>, %arg2: memref<1x1xf32, #tpu.memory_space<vmem>>, %arg3: memref<1x1xf32, #tpu.memory_space<vmem>>, %arg4: memref<8x512xf32, #tpu.memory_space<vmem>>, %arg5: memref<16x512xf32, #tpu.memory_space<vmem>>, %arg6: memref<8x8xf32, #tpu.memory_space<vmem>>, %arg7: memref<8x16xf32, #tpu.memory_space<vmem>>, %arg8: memref<8x1xf32, #tpu.memory_space<vmem>>, %arg9: memref<8x512xf32, #tpu.memory_space<vmem>>, %arg10: memref<8x1xf32, #tpu.memory_space<vmem>>, %arg11: memref<8x1xf32, #tpu.memory_space<vmem>>) attributes {dimension_semantics = [#tpu.dimension_semantics<arbitrary>], iteration_bounds = array<i64: 1>, scalar_prefetch = 0 : i64, scratch_operands = 0 : i64, tpu.core_type = #tpu.core_type<tc>, window_params = [{transform_indices = @transform_0, window_bounds = array<i64: 1, 512>}, {pipeline_mode = #tpu.pipeline_mode<synchronous>, transform_indices = @transform_1, window_bounds = array<i64: 1, 1>}, {pipeline_mode = #tpu.pipeline_mode<synchronous>, transform_indices = @transform_2, window_bounds = array<i64: 1, 1>}, {transform_indices = @transform_3, window_bounds = array<i64: 8, 512>}, {transform_indices = @transform_4, window_bounds = array<i64: 16, 512>}, {pipeline_mode = #tpu.pipeline_mode<synchronous>, transform_indices = @transform_5, window_bounds = array<i64: 8, 8>}, {pipeline_mode = #tpu.pipeline_mode<synchronous>, transform_indices = @transform_6, window_bounds = array<i64: 8, 16>}, {pipeline_mode = #tpu.pipeline_mode<synchronous>, transform_indices = @transform_7, window_bounds = array<i64: 8, 1>}, {transform_indices = @transform_8, window_bounds = array<i64: 8, 512>}, {pipeline_mode = #tpu.pipeline_mode<synchronous>, transform_indices = @transform_9, window_bounds = array<i64: 8, 1>}, {pipeline_mode = #tpu.pipeline_mode<synchronous>, transform_indices = @transform_10, window_bounds = array<i64: 8, 1>}]} {
    %c0 = arith.constant 0 : index
    %c0_0 = arith.constant 0 : index
    %0 = vector.load %arg2[%c0, %c0_0] : memref<1x1xf32, #tpu.memory_space<vmem>>, vector<1x1xf32>
    %c0_1 = arith.constant 0 : index
    %c0_2 = arith.constant 0 : index
    %1 = vector.load %arg1[%c0_1, %c0_2] : memref<1x512xf32, #tpu.memory_space<vmem>>, vector<1x512xf32>
    %2 = vector.broadcast %0 : vector<1x1xf32> to vector<1x512xf32>
    %3 = arith.mulf %2, %1 : vector<1x512xf32>
    %c0_3 = arith.constant 0 : index
    %c0_4 = arith.constant 0 : index
    %4 = vector.load %arg3[%c0_3, %c0_4] : memref<1x1xf32, #tpu.memory_space<vmem>>, vector<1x1xf32>
    %5 = vector.broadcast %4 : vector<1x1xf32> to vector<1x512xf32>
    %6 = arith.addf %3, %5 : vector<1x512xf32>
    %7 = arith.negf %6 : vector<1x512xf32>
    %8 = math.exp %7 : vector<1x512xf32>
    %cst = arith.constant 1.000000e+00 : f32
    %9 = vector.broadcast %cst : f32 to vector<1x512xf32>
    %10 = arith.addf %9, %8 : vector<1x512xf32>
    %11 = arith.divf %9, %10 : vector<1x512xf32>
    %12 = arith.negf %11 : vector<1x512xf32>
    %13 = math.exp %12 : vector<1x512xf32>
    %cst_5 = arith.constant 1.000000e+00 : f32
    %14 = vector.broadcast %cst_5 : f32 to vector<1x512xf32>
    %15 = arith.addf %14, %13 : vector<1x512xf32>
    %16 = arith.divf %14, %15 : vector<1x512xf32>
    %c0_6 = arith.constant 0 : index
    %c0_7 = arith.constant 0 : index
    %17 = vector.load %arg4[%c0_6, %c0_7] : memref<8x512xf32, #tpu.memory_space<vmem>>, vector<8x512xf32>
    %18 = vector.broadcast %16 : vector<1x512xf32> to vector<8x512xf32>
    %19 = arith.mulf %18, %17 : vector<8x512xf32>
    %c0_8 = arith.constant 0 : index
    %c0_9 = arith.constant 0 : index
    %20 = vector.load %arg6[%c0_8, %c0_9] : memref<8x8xf32, #tpu.memory_space<vmem>>, vector<8x8xf32>
    %cst_10 = arith.constant dense<0.000000e+00> : vector<8x512xf32>
    %21 = tpu.matmul %20, %19, %cst_10 {dimension_numbers = #tpu.dot_dimension_numbers<[1], [0], [0], [1], [0, 0, 1, 1], [], []>} : vector<8x8xf32>, vector<8x512xf32>, vector<8x512xf32> -> vector<8x512xf32>
    %c0_11 = arith.constant 0 : index
    %c0_12 = arith.constant 0 : index
    %22 = vector.load %arg7[%c0_11, %c0_12] : memref<8x16xf32, #tpu.memory_space<vmem>>, vector<8x16xf32>
    %c0_13 = arith.constant 0 : index
    %c0_14 = arith.constant 0 : index
    %23 = vector.load %arg5[%c0_13, %c0_14] : memref<16x512xf32, #tpu.memory_space<vmem>>, vector<16x512xf32>
    %cst_15 = arith.constant dense<0.000000e+00> : vector<8x512xf32>
    %24 = tpu.matmul %22, %23, %cst_15 {dimension_numbers = #tpu.dot_dimension_numbers<[1], [0], [0], [1], [0, 0, 1, 1], [], []>} : vector<8x16xf32>, vector<16x512xf32>, vector<8x512xf32> -> vector<8x512xf32>
    %25 = arith.addf %21, %24 : vector<8x512xf32>
    %c0_16 = arith.constant 0 : index
    %c0_17 = arith.constant 0 : index
    %26 = vector.load %arg8[%c0_16, %c0_17] : memref<8x1xf32, #tpu.memory_space<vmem>>, vector<8x1xf32>
    %27 = vector.broadcast %26 : vector<8x1xf32> to vector<8x512xf32>
    %28 = arith.addf %25, %27 : vector<8x512xf32>
    %c0_18 = arith.constant 0 : index
    %c0_19 = arith.constant 0 : index
    %29 = vector.load %arg9[%c0_18, %c0_19] : memref<8x512xf32, #tpu.memory_space<vmem>>, vector<8x512xf32>
    tpu.vector_store %arg9[%c0_18, %c0_19], %28 {strides = array<i32>} : memref<8x512xf32, #tpu.memory_space<vmem>>, vector<8x512xf32>,
    %c512_i32 = arith.constant 512 : i32
    %30 = arith.muli %arg0, %c512_i32 : i32
    %31 = tpu.iota {dimensions = array<i32: 1>} : vector<1x512xi32>
    %32 = vector.broadcast %30 : i32 to vector<1x512xi32>
    %33 = arith.addi %32, %31 : vector<1x512xi32>
    %c512_i32_20 = arith.constant 512 : i32
    %34 = vector.broadcast %c512_i32_20 : i32 to vector<1x512xi32>
    %35 = arith.cmpi slt, %33, %34 : vector<1x512xi32>
    %cst_21 = arith.constant 0.000000e+00 : f32
    %36 = vector.shape_cast %35 : vector<1x512xi1> to vector<1x512xi1>
    %37 = vector.broadcast %36 : vector<1x512xi1> to vector<8x512xi1>
    %38 = vector.broadcast %cst_21 : f32 to vector<8x512xf32>
    %39 = arith.select %37, %28, %38 : vector<8x512xi1>, vector<8x512xf32>
    %c0_i32 = arith.constant 0 : i32
    %40 = arith.cmpi eq, %arg0, %c0_i32 : i32
    %41 = arith.extui %40 : i1 to i32
    %c0_i32_22 = arith.constant 0 : i32
    %42 = arith.cmpi ne, %41, %c0_i32_22 : i32
    scf.if %42 {
      %cst_33 = arith.constant 0.000000e+00 : f32
      %54 = vector.broadcast %cst_33 : f32 to vector<8x1xf32>
      %c0_34 = arith.constant 0 : index
      %c0_35 = arith.constant 0 : index
      %55 = vector.load %arg10[%c0_34, %c0_35] : memref<8x1xf32, #tpu.memory_space<vmem>>, vector<8x1xf32>
      tpu.vector_store %arg10[%c0_34, %c0_35], %54 {strides = array<i32>} : memref<8x1xf32, #tpu.memory_space<vmem>>, vector<8x1xf32>,
      %cst_36 = arith.constant 0.000000e+00 : f32
      %56 = vector.broadcast %cst_36 : f32 to vector<8x1xf32>
      %c0_37 = arith.constant 0 : index
      %c0_38 = arith.constant 0 : index
      %57 = vector.load %arg11[%c0_37, %c0_38] : memref<8x1xf32, #tpu.memory_space<vmem>>, vector<8x1xf32>
      tpu.vector_store %arg11[%c0_37, %c0_38], %56 {strides = array<i32>} : memref<8x1xf32, #tpu.memory_space<vmem>>, vector<8x1xf32>,
    } else {
    }
    %c0_23 = arith.constant 0 : index
    %c0_24 = arith.constant 0 : index
    %43 = vector.load %arg10[%c0_23, %c0_24] : memref<8x1xf32, #tpu.memory_space<vmem>>, vector<8x1xf32>
    %cst_25 = arith.constant dense<0.000000e+00> : vector<8xf32>
    %44 = vector.multi_reduction <add>, %39, %cst_25 [1] : vector<8x512xf32> to vector<8xf32>
    %45 = vector.shape_cast %44 : vector<8xf32> to vector<8x1xf32>
    %46 = arith.addf %43, %45 : vector<8x1xf32>
    %c0_26 = arith.constant 0 : index
    %c0_27 = arith.constant 0 : index
    %47 = vector.load %arg10[%c0_26, %c0_27] : memref<8x1xf32, #tpu.memory_space<vmem>>, vector<8x1xf32>
    tpu.vector_store %arg10[%c0_26, %c0_27], %46 {strides = array<i32>} : memref<8x1xf32, #tpu.memory_space<vmem>>, vector<8x1xf32>,
    %c0_28 = arith.constant 0 : index
    %c0_29 = arith.constant 0 : index
    %48 = vector.load %arg11[%c0_28, %c0_29] : memref<8x1xf32, #tpu.memory_space<vmem>>, vector<8x1xf32>
    %49 = arith.mulf %39, %39 : vector<8x512xf32>
    %cst_30 = arith.constant dense<0.000000e+00> : vector<8xf32>
    %50 = vector.multi_reduction <add>, %49, %cst_30 [1] : vector<8x512xf32> to vector<8xf32>
    %51 = vector.shape_cast %50 : vector<8xf32> to vector<8x1xf32>
    %52 = arith.addf %48, %51 : vector<8x1xf32>
    %c0_31 = arith.constant 0 : index
    %c0_32 = arith.constant 0 : index
    %53 = vector.load %arg11[%c0_31, %c0_32] : memref<8x1xf32, #tpu.memory_space<vmem>>, vector<8x1xf32>
    tpu.vector_store %arg11[%c0_31, %c0_32], %52 {strides = array<i32>} : memref<8x1xf32, #tpu.memory_space<vmem>>, vector<8x1xf32>,
    return
  }
  func.func @transform_0(%arg0: i32) -> (i32, i32) {
    %c0_i32 = arith.constant 0 : i32
    %c0_i32_0 = arith.constant 0 : i32
    return %c0_i32, %arg0 : i32, i32
  }
  func.func @transform_1(%arg0: i32) -> (i32, i32) {
    %c0_i32 = arith.constant 0 : i32
    %c0_i32_0 = arith.constant 0 : i32
    %c0_i32_1 = arith.constant 0 : i32
    return %c0_i32, %c0_i32_0 : i32, i32
  }
  func.func @transform_2(%arg0: i32) -> (i32, i32) {
    %c0_i32 = arith.constant 0 : i32
    %c0_i32_0 = arith.constant 0 : i32
    %c0_i32_1 = arith.constant 0 : i32
    return %c0_i32, %c0_i32_0 : i32, i32
  }
  func.func @transform_3(%arg0: i32) -> (i32, i32) {
    %c0_i32 = arith.constant 0 : i32
    %c0_i32_0 = arith.constant 0 : i32
    return %c0_i32, %arg0 : i32, i32
  }
  func.func @transform_4(%arg0: i32) -> (i32, i32) {
    %c0_i32 = arith.constant 0 : i32
    %c0_i32_0 = arith.constant 0 : i32
    return %c0_i32, %arg0 : i32, i32
  }
  func.func @transform_5(%arg0: i32) -> (i32, i32) {
    %c0_i32 = arith.constant 0 : i32
    %c0_i32_0 = arith.constant 0 : i32
    %c0_i32_1 = arith.constant 0 : i32
    return %c0_i32, %c0_i32_0 : i32, i32
  }
  func.func @transform_6(%arg0: i32) -> (i32, i32) {
    %c0_i32 = arith.constant 0 : i32
    %c0_i32_0 = arith.constant 0 : i32
    %c0_i32_1 = arith.constant 0 : i32
    return %c0_i32, %c0_i32_0 : i32, i32
  }
  func.func @transform_7(%arg0: i32) -> (i32, i32) {
    %c0_i32 = arith.constant 0 : i32
    %c0_i32_0 = arith.constant 0 : i32
    %c0_i32_1 = arith.constant 0 : i32
    return %c0_i32, %c0_i32_0 : i32, i32
  }
  func.func @transform_8(%arg0: i32) -> (i32, i32) {
    %c0_i32 = arith.constant 0 : i32
    %c0_i32_0 = arith.constant 0 : i32
    return %c0_i32, %arg0 : i32, i32
  }
  func.func @transform_9(%arg0: i32) -> (i32, i32) {
    %c0_i32 = arith.constant 0 : i32
    %c0_i32_0 = arith.constant 0 : i32
    %c0_i32_1 = arith.constant 0 : i32
    return %c0_i32, %c0_i32_0 : i32, i32
  }
  func.func @transform_10(%arg0: i32) -> (i32, i32) {
    %c0_i32 = arith.constant 0 : i32
    %c0_i32_0 = arith.constant 0 : i32
    %c0_i32_1 = arith.constant 0 : i32
    return %c0_i32, %c0_i32_0 : i32, i32
  }
}

</mosaic_0001>

<llo_original>
// kernel: attention_up_block_forward.7
$region0: #{attention_up_block_forward.7}
  #allocation0 [shape = 'u32[]', space=smem, size = 0x4, offset = 0x4, fixed_abs, tag = 'smem constant byte address 0x4 - core index']
  #allocation1 [shape = 'u32[144,128]{1,0:T(1,128)}', space=vmem, size = 0x12000, scoped, tag = 'internal scratch']
  %s0 = inlined_call_operand.vmem [shape: f32[16,128], index: 0, kind: input, shape index: {}]
  %s1 = inlined_call_operand.vmem [shape: f32[4,16], index: 1, kind: input, shape index: {}]
  %s2 = inlined_call_operand.vmem [shape: f32[4,1], index: 2, kind: input, shape index: {}]
  %s3 = inlined_call_operand.vmem [shape: f32[4,128], index: 3, kind: output, shape index: {0}]
  %s4 = inlined_call_operand.vmem [shape: f32[4,1], index: 4, kind: output, shape index: {1}]
  %s5 = inlined_call_operand.vmem [shape: f32[4,1], index: 5, kind: output, shape index: {2}]
  %6 = xla_tuple %s3, %s4, %s5
  %s7 = sld [smem:[#allocation0]]
  $region42: #{attention_up_block_forward.7} parent=0
    _
  %s9 = ssub.s32 1, %s7
  %s10 = scalar_select 0, %s9, %s7
  // Predicated region
  $region2: #{attention_up_block_forward.7} parent=0 // pred_check
    _
  $region3: #{attention_up_block_forward.7} parent=0 // pred_check_branch
    %12 = sbr.rel (0) target = $region5
  $region4: #{attention_up_block_forward.7} parent=0 // pred_region
    _
  $region5: #{attention_up_block_forward.7} parent=0 // pred_fallthru
    _
  // Predicated region
  $region6: #{attention_up_block_forward.7} parent=0 // pred_check
    _
  $region7: #{attention_up_block_forward.7} parent=0 // pred_check_branch
    %14 = sbr.rel (0) target = $region9
  $region8: #{attention_up_block_forward.7} parent=0 // pred_region
    _
  $region9: #{attention_up_block_forward.7} parent=0 // pred_fallthru
    _
  // Predicated region
  $region10: #{attention_up_block_forward.7} parent=0 // pred_check
    _
  $region11: #{attention_up_block_forward.7} parent=0 // pred_check_branch
    %16 = sbr.rel (0) target = $region13
  $region12: #{attention_up_block_forward.7} parent=0 // pred_region
    _
  $region13: #{attention_up_block_forward.7} parent=0 // pred_fallthru
    _
  %v17 = vld [vmem:[%s1] sm:$0xf]
  %v18 = vld [vmem:[%s0] sm:$0xff]
  %v19 = vld [vmem:[%s0 + $0x8] sm:$0xff]
  %v20 = vld [vmem:[%s2] sm:$0xf]
  %22 = vset.pattern.permute.xlu0 0
  %23 = vperm.xlu0 %22, %v20
  %v24 = vpop.permute.xlu0 %23
  %vm26 = vcmask 130048
  %v28 = vsel %vm26, %v17, 0
  %30 = vmatprep.subr.mxu0 0.0
  %31 = vmatpush1.msra.mxu0 %v18
  %32 = vmatprep.subr.mxu0 0.0
  %33 = vmatpush1.msra.mxu0 %v19
  %34 = vmatprep.subr.mxu0 0.0
  %35 = vmatpush1.msra.mxu0 0.0
  %36 = vmatprep.subr.mxu0 0.0
  %37 = vmatpush1.msra.mxu0 0.0
  %38 = vmatprep.subr.mxu0 0.0
  %39 = vmatpush1.msra.mxu0 0.0
  %40 = vmatprep.subr.mxu0 0.0
  %41 = vmatpush1.msra.mxu0 0.0
  %42 = vmatprep.subr.mxu0 0.0
  %43 = vmatpush1.msra.mxu0 0.0
  %44 = vmatprep.subr.mxu0 0.0
  %45 = vmatpush1.msra.mxu0 0.0
  %46 = vmatprep.subr.mxu0 0.0
  %47 = vmatpush1.msra.mxu0 0.0
  %48 = vmatprep.subr.mxu0 0.0
  %49 = vmatpush1.msra.mxu0 0.0
  %50 = vmatprep.subr.mxu0 0.0
  %51 = vmatpush1.msra.mxu0 0.0
  %52 = vmatprep.subr.mxu0 0.0
  %53 = vmatpush1.msra.mxu0 0.0
  %54 = vmatprep.subr.mxu0 0.0
  %55 = vmatpush1.msra.mxu0 0.0
  %56 = vmatprep.subr.mxu0 0.0
  %57 = vmatpush1.msra.mxu0 0.0
  %58 = vmatprep.subr.mxu0 0.0
  %59 = vmatpush1.msra.mxu0 0.0
  %60 = vmatprep.subr.mxu0 0.0
  %61 = vmatpush1.msra.mxu0 0.0
  %62 = vmatprep.subr.mxu0 0.0
  %63 = vmatpush1.msra.mxu0 0.0
  %64 = vmatprep.subr.mxu0 0.0
  %65 = vmatpush1.msra.mxu0 0.0
  %66 = vmatprep.subr.mxu0 0.0
  %67 = vmatpush1.msra.mxu0 0.0
  %68 = vmatprep.subr.mxu0 0.0
  %69 = vmatpush1.msra.mxu0 0.0
  %70 = vmatprep.subr.mxu0 0.0
  %71 = vmatpush1.msra.mxu0 0.0
  %72 = vmatprep.subr.mxu0 0.0
  %73 = vmatpush1.msra.mxu0 0.0
  %74 = vmatprep.subr.mxu0 0.0
  %75 = vmatpush1.msra.mxu0 0.0
  %76 = vmatprep.subr.mxu0 0.0
  %77 = vmatpush1.msra.mxu0 0.0
  %78 = vmatprep.subr.mxu0 0.0
  %79 = vmatpush1.msra.mxu0 0.0
  %80 = vmatprep.subr.mxu0 0.0
  %81 = vmatpush1.msra.mxu0 0.0
  %82 = vmatprep.subr.mxu0 0.0
  %83 = vmatpush1.msra.mxu0 0.0
  %84 = vmatprep.subr.mxu0 0.0
  %85 = vmatpush1.msra.mxu0 0.0
  %86 = vmatprep.subr.mxu0 0.0
  %87 = vmatpush1.msra.mxu0 0.0
  %88 = vmatprep.subr.mxu0 0.0
  %89 = vmatpush1.msra.mxu0 0.0
  %90 = vmatprep.subr.mxu0 0.0
  %91 = vmatpush1.msra.mxu0 0.0
  %92 = vmatprep.subr.mxu0 0.0
  %93 = vmatpush1.msra.mxu0 0.0
  %94 = vmatprep.mubr.f32.mxu0 0.0
  %95 = vmatmul.mubr.f32.gmra.mrb[0].mxu0 %v28
  %v96 = vpop.f32.mrb[0].mxu0
  %v97 = vadd.f32 %v24, %v96
  %v98 = vpop.f32.mrb[0].mxu0
  %99 = vdwg.mxu0
  %100 = vst [vmem:[%s3] sm:$0xf] %v97
  %s101 = smul.u32 0, 128
  %v102 = vlaneseq
  %v103 = vand.u32 %v102, 127
  %v104 = vstv %s101
  %v105 = vadd.s32 %v104, %v103
  %vm106 = vcmp.lt.s32.totalorder %v105, 128
  %v107 = vsel %vm106, 1, 0
  %vm108 = vcmp.eq.s32.totalorder %v107, 1
  %v109 = vsel %vm108, %v97, 0.0
  %p110 = scmp.eq.s32.totalorder 0, 0
  // Predicated region
  $region14: #{attention_up_block_forward.7} parent=0 // pred_check
    %p111 = pneg %p110
  $region15: #{attention_up_block_forward.7} parent=0 // pred_check_branch
    %113 = sbr.rel (%p111) target = $region17
  $region16: #{attention_up_block_forward.7} parent=0 // pred_region
    %vm114 = vcmask 3072
    %115 = vst.msk [vmem:[%s4] sm:$0xf] %vm114, 0.0
    %116 = vst.msk [vmem:[%s5] sm:$0xf] %vm114, 0.0
  $region17: #{attention_up_block_forward.7} parent=0 // pred_fallthru
    _
  %v117 = vld [vmem:[%s4] sm:$0xf]
  %vm118 = vcmask 1043456
  %v119 = vsel %vm118, %v109, 0.0
  %120 = vadd.xlane.f32.xlu0 %v119
  %v121 = vpop.xlane.xlu0 %120
  %v122 = vadd.f32 %v117, %v121
  %vm123 = vcmask 3072
  %124 = vst.msk [vmem:[%s4] sm:$0xf] %vm123, %v122
  %v125 = vld [vmem:[%s5] sm:$0xf]
  %v126 = vmul.f32 %v109, %v109
  %v127 = vsel %vm118, %v126, 0.0
  %128 = vadd.xlane.f32.xlu0 %v127
  %v129 = vpop.xlane.xlu0 %128
  %v130 = vadd.f32 %v125, %v129
  %131 = vst.msk [vmem:[%s5] sm:$0xf] %vm123, %v130
  // Predicated region
  $region18: #{attention_up_block_forward.7} parent=0 // pred_check
    _
  $region19: #{attention_up_block_forward.7} parent=0 // pred_check_branch
    %133 = sbr.rel (0) target = $region21
  $region20: #{attention_up_block_forward.7} parent=0 // pred_region
    _
  $region21: #{attention_up_block_forward.7} parent=0 // pred_fallthru
    _
  // Predicated region
  $region22: #{attention_up_block_forward.7} parent=0 // pred_check
    _
  $region23: #{attention_up_block_forward.7} parent=0 // pred_check_branch
    %135 = sbr.rel (0) target = $region25
  $region24: #{attention_up_block_forward.7} parent=0 // pred_region
    _
  $region25: #{attention_up_block_forward.7} parent=0 // pred_fallthru
    _
  // Predicated region
  $region26: #{attention_up_block_forward.7} parent=0 // pred_check
    _
  $region27: #{attention_up_block_forward.7} parent=0 // pred_check_branch
    %137 = sbr.rel (0) target = $region29
  $region28: #{attention_up_block_forward.7} parent=0 // pred_region
    _
  $region29: #{attention_up_block_forward.7} parent=0 // pred_fallthru
    _
  // Predicated region
  $region30: #{attention_up_block_forward.7} parent=0 // pred_check
    _
  $region31: #{attention_up_block_forward.7} parent=0 // pred_check_branch
    %139 = sbr.rel (0) target = $region33
  $region32: #{attention_up_block_forward.7} parent=0 // pred_region
    _
  $region33: #{attention_up_block_forward.7} parent=0 // pred_fallthru
    _
  // Predicated region
  $region34: #{attention_up_block_forward.7} parent=0 // pred_check
    _
  $region35: #{attention_up_block_forward.7} parent=0 // pred_check_branch
    %141 = sbr.rel (0) target = $region37
  $region36: #{attention_up_block_forward.7} parent=0 // pred_region
    _
  $region37: #{attention_up_block_forward.7} parent=0 // pred_fallthru
    _
  // Predicated region
  $region38: #{attention_up_block_forward.7} parent=0 // pred_check
    _
  $region39: #{attention_up_block_forward.7} parent=0 // pred_check_branch
    %143 = sbr.rel (0) target = $region41
  $region40: #{attention_up_block_forward.7} parent=0 // pred_region
    _
  $region41: #{attention_up_block_forward.7} parent=0 // pred_fallthru
    _

// kernel: attention_up_block_forward.6
$region0: #{attention_up_block_forward.6}
  #allocation0 [shape = 'u32[]', space=smem, size = 0x4, offset = 0x4, fixed_abs, tag = 'smem constant byte address 0x4 - core index']
  #allocation1 [shape = 'u32[144,128]{1,0:T(1,128)}', space=vmem, size = 0x12000, scoped, tag = 'internal scratch']
  %s0 = inlined_call_operand.vmem [shape: f32[8,512], index: 0, kind: input, shape index: {}]
  %s1 = inlined_call_operand.vmem [shape: f32[4,8], index: 1, kind: input, shape index: {}]
  %s2 = inlined_call_operand.vmem [shape: f32[4,1], index: 2, kind: input, shape index: {}]
  %s3 = inlined_call_operand.vmem [shape: f32[4,512], index: 3, kind: output, shape index: {0}]
  %s4 = inlined_call_operand.vmem [shape: f32[4,1], index: 4, kind: output, shape index: {1}]
  %s5 = inlined_call_operand.vmem [shape: f32[4,1], index: 5, kind: output, shape index: {2}]
  %6 = xla_tuple %s3, %s4, %s5
  %s7 = sld [smem:[#allocation0]]
  $region42: #{attention_up_block_forward.6} parent=0
    _
  %s9 = ssub.s32 1, %s7
  %s10 = scalar_select 0, %s9, %s7
  // Predicated region
  $region2: #{attention_up_block_forward.6} parent=0 // pred_check
    _
  $region3: #{attention_up_block_forward.6} parent=0 // pred_check_branch
    %12 = sbr.rel (0) target = $region5
  $region4: #{attention_up_block_forward.6} parent=0 // pred_region
    _
  $region5: #{attention_up_block_forward.6} parent=0 // pred_fallthru
    _
  // Predicated region
  $region6: #{attention_up_block_forward.6} parent=0 // pred_check
    _
  $region7: #{attention_up_block_forward.6} parent=0 // pred_check_branch
    %14 = sbr.rel (0) target = $region9
  $region8: #{attention_up_block_forward.6} parent=0 // pred_region
    _
  $region9: #{attention_up_block_forward.6} parent=0 // pred_fallthru
    _
  // Predicated region
  $region10: #{attention_up_block_forward.6} parent=0 // pred_check
    _
  $region11: #{attention_up_block_forward.6} parent=0 // pred_check_branch
    %16 = sbr.rel (0) target = $region13
  $region12: #{attention_up_block_forward.6} parent=0 // pred_region
    _
  $region13: #{attention_up_block_forward.6} parent=0 // pred_fallthru
    _
  %v17 = vld [vmem:[%s1] sm:$0xf]
  %v18 = vld [vmem:[%s0] sm:$0xff]
  %v19 = vld [vmem:[%s0 + $0x8] sm:$0xff]
  %v20 = vld [vmem:[%s0 + $0x10] sm:$0xff]
  %v21 = vld [vmem:[%s0 + $0x18] sm:$0xff]
  %v22 = vld [vmem:[%s2] sm:$0xf]
  %24 = vset.pattern.permute.xlu0 0
  %25 = vperm.xlu0 %24, %v22
  %v26 = vpop.permute.xlu0 %25
  %vm28 = vcmask 64512
  %v30 = vsel %vm28, %v17, 0
  %32 = vmatprep.subr.mxu0 %v19
  %33 = vmatpush1.msra.mxu0 %v18
  %34 = vmatprep.subr.mxu0 0.0
  %35 = vmatpush1.msra.mxu0 0.0
  %36 = vmatprep.subr.mxu0 0.0
  %37 = vmatpush1.msra.mxu0 0.0
  %38 = vmatprep.subr.mxu0 0.0
  %39 = vmatpush1.msra.mxu0 0.0
  %40 = vmatprep.subr.mxu0 0.0
  %41 = vmatpush1.msra.mxu0 0.0
  %42 = vmatprep.subr.mxu0 0.0
  %43 = vmatpush1.msra.mxu0 0.0
  %44 = vmatprep.subr.mxu0 0.0
  %45 = vmatpush1.msra.mxu0 0.0
  %46 = vmatprep.subr.mxu0 0.0
  %47 = vmatpush1.msra.mxu0 0.0
  %48 = vmatprep.subr.mxu0 0.0
  %49 = vmatpush1.msra.mxu0 0.0
  %50 = vmatprep.subr.mxu0 0.0
  %51 = vmatpush1.msra.mxu0 0.0
  %52 = vmatprep.subr.mxu0 0.0
  %53 = vmatpush1.msra.mxu0 0.0
  %54 = vmatprep.subr.mxu0 0.0
  %55 = vmatpush1.msra.mxu0 0.0
  %56 = vmatprep.subr.mxu0 0.0
  %57 = vmatpush1.msra.mxu0 0.0
  %58 = vmatprep.subr.mxu0 0.0
  %59 = vmatpush1.msra.mxu0 0.0
  %60 = vmatprep.subr.mxu0 0.0
  %61 = vmatpush1.msra.mxu0 0.0
  %62 = vmatprep.subr.mxu0 0.0
  %63 = vmatpush1.msra.mxu0 0.0
  %64 = vmatprep.subr.mxu0 0.0
  %65 = vmatpush1.msra.mxu0 0.0
  %66 = vmatprep.subr.mxu0 0.0
  %67 = vmatpush1.msra.mxu0 0.0
  %68 = vmatprep.subr.mxu0 0.0
  %69 = vmatpush1.msra.mxu0 0.0
  %70 = vmatprep.subr.mxu0 0.0
  %71 = vmatpush1.msra.mxu0 0.0
  %72 = vmatprep.subr.mxu0 0.0
  %73 = vmatpush1.msra.mxu0 0.0
  %74 = vmatprep.subr.mxu0 0.0
  %75 = vmatpush1.msra.mxu0 0.0
  %76 = vmatprep.subr.mxu0 0.0
  %77 = vmatpush1.msra.mxu0 0.0
  %78 = vmatprep.subr.mxu0 0.0
  %79 = vmatpush1.msra.mxu0 0.0
  %80 = vmatprep.subr.mxu0 0.0
  %81 = vmatpush1.msra.mxu0 0.0
  %82 = vmatprep.subr.mxu0 0.0
  %83 = vmatpush1.msra.mxu0 0.0
  %84 = vmatprep.subr.mxu0 0.0
  %85 = vmatpush1.msra.mxu0 0.0
  %86 = vmatprep.subr.mxu0 0.0
  %87 = vmatpush1.msra.mxu0 0.0
  %88 = vmatprep.subr.mxu0 0.0
  %89 = vmatpush1.msra.mxu0 0.0
  %90 = vmatprep.subr.mxu0 0.0
  %91 = vmatpush1.msra.mxu0 0.0
  %92 = vmatprep.subr.mxu0 0.0
  %93 = vmatpush1.msra.mxu0 0.0
  %94 = vmatprep.subr.mxu0 0.0
  %95 = vmatpush1.msra.mxu0 0.0
  %96 = vmatprep.mubr.f32.mxu0 0.0
  %97 = vmatmul.mubr.f32.gmra.mrb[0].mxu0 %v30
  %v98 = vpop.f32.mrb[0].mxu0
  %v99 = vadd.f32 %v26, %v98
  %v100 = vpop.f32.mrb[0].mxu0
  %v101 = vadd.f32 %v26, %v100
  %102 = vdwg.mxu0
  %103 = vmatprep.subr.mxu0 %v21
  %104 = vmatpush1.msra.mxu0 %v20
  %105 = vmatprep.subr.mxu0 0.0
  %106 = vmatpush1.msra.mxu0 0.0
  %107 = vmatprep.subr.mxu0 0.0
  %108 = vmatpush1.msra.mxu0 0.0
  %109 = vmatprep.subr.mxu0 0.0
  %110 = vmatpush1.msra.mxu0 0.0
  %111 = vmatprep.subr.mxu0 0.0
  %112 = vmatpush1.msra.mxu0 0.0
  %113 = vmatprep.subr.mxu0 0.0
  %114 = vmatpush1.msra.mxu0 0.0
  %115 = vmatprep.subr.mxu0 0.0
  %116 = vmatpush1.msra.mxu0 0.0
  %117 = vmatprep.subr.mxu0 0.0
  %118 = vmatpush1.msra.mxu0 0.0
  %119 = vmatprep.subr.mxu0 0.0
  %120 = vmatpush1.msra.mxu0 0.0
  %121 = vmatprep.subr.mxu0 0.0
  %122 = vmatpush1.msra.mxu0 0.0
  %123 = vmatprep.subr.mxu0 0.0
  %124 = vmatpush1.msra.mxu0 0.0
  %125 = vmatprep.subr.mxu0 0.0
  %126 = vmatpush1.msra.mxu0 0.0
  %127 = vmatprep.subr.mxu0 0.0
  %128 = vmatpush1.msra.mxu0 0.0
  %129 = vmatprep.subr.mxu0 0.0
  %130 = vmatpush1.msra.mxu0 0.0
  %131 = vmatprep.subr.mxu0 0.0
  %132 = vmatpush1.msra.mxu0 0.0
  %133 = vmatprep.subr.mxu0 0.0
  %134 = vmatpush1.msra.mxu0 0.0
  %135 = vmatprep.subr.mxu0 0.0
  %136 = vmatpush1.msra.mxu0 0.0
  %137 = vmatprep.subr.mxu0 0.0
  %138 = vmatpush1.msra.mxu0 0.0
  %139 = vmatprep.subr.mxu0 0.0
  %140 = vmatpush1.msra.mxu0 0.0
  %141 = vmatprep.subr.mxu0 0.0
  %142 = vmatpush1.msra.mxu0 0.0
  %143 = vmatprep.subr.mxu0 0.0
  %144 = vmatpush1.msra.mxu0 0.0
  %145 = vmatprep.subr.mxu0 0.0
  %146 = vmatpush1.msra.mxu0 0.0
  %147 = vmatprep.subr.mxu0 0.0
  %148 = vmatpush1.msra.mxu0 0.0
  %149 = vmatprep.subr.mxu0 0.0
  %150 = vmatpush1.msra.mxu0 0.0
  %151 = vmatprep.subr.mxu0 0.0
  %152 = vmatpush1.msra.mxu0 0.0
  %153 = vmatprep.subr.mxu0 0.0
  %154 = vmatpush1.msra.mxu0 0.0
  %155 = vmatprep.subr.mxu0 0.0
  %156 = vmatpush1.msra.mxu0 0.0
  %157 = vmatprep.subr.mxu0 0.0
  %158 = vmatpush1.msra.mxu0 0.0
  %159 = vmatprep.subr.mxu0 0.0
  %160 = vmatpush1.msra.mxu0 0.0
  %161 = vmatprep.subr.mxu0 0.0
  %162 = vmatpush1.msra.mxu0 0.0
  %163 = vmatprep.subr.mxu0 0.0
  %164 = vmatpush1.msra.mxu0 0.0
  %165 = vmatprep.subr.mxu0 0.0
  %166 = vmatpush1.msra.mxu0 0.0
  %167 = vmatprep.mubr.f32.mxu0 0.0
  %168 = vmatmul.mubr.f32.gmra.mrb[0].mxu0 %v30
  %v169 = vpop.f32.mrb[0].mxu0
  %v170 = vadd.f32 %v26, %v169
  %v171 = vpop.f32.mrb[0].mxu0
  %v172 = vadd.f32 %v26, %v171
  %173 = vdwg.mxu0
  %v178 = vcombine.low %v99, %v101
  %v179 = vcombine.low %v170, %v172
  %182 = vst [vmem:[%s3] sm:$0xff] %v178
  %183 = vst [vmem:[%s3 + $0x8] sm:$0xff] %v179
  %s184 = smul.u32 0, 512
  %v185 = vlaneseq
  %v186 = vand.u32 %v185, 127
  %v187 = vadd.s32 %v186, 128
  %v188 = vadd.s32 %v186, 256
  %v189 = vadd.s32 %v186, 384
  %v190 = vstv %s184
  %v191 = vadd.s32 %v190, %v186
  %v192 = vadd.s32 %v190, %v187
  %v193 = vadd.s32 %v190, %v188
  %v194 = vadd.s32 %v190, %v189
  %vm195 = vcmp.lt.s32.totalorder %v191, 512
  %vm196 = vcmp.lt.s32.totalorder %v192, 512
  %vm197 = vcmp.lt.s32.totalorder %v193, 512
  %vm198 = vcmp.lt.s32.totalorder %v194, 512
  %v199 = vsel %vm195, 1, 0
  %v200 = vsel %vm196, 1, 0
  %v201 = vsel %vm197, 1, 0
  %v202 = vsel %vm198, 1, 0
  %vm203 = vcmp.eq.s32.totalorder %v199, 1
  %vm204 = vcmp.eq.s32.totalorder %v200, 1
  %vm205 = vcmp.eq.s32.totalorder %v201, 1
  %vm206 = vcmp.eq.s32.totalorder %v202, 1
  %v207 = vsel %vm203, %v99, 0.0
  %v208 = vsel %vm204, %v101, 0.0
  %v209 = vsel %vm205, %v170, 0.0
  %v210 = vsel %vm206, %v172, 0.0
  %p211 = scmp.eq.s32.totalorder 0, 0
  // Predicated region
  $region14: #{attention_up_block_forward.6} parent=0 // pred_check
    %p212 = pneg %p211
  $region15: #{attention_up_block_forward.6} parent=0 // pred_check_branch
    %214 = sbr.rel (%p212) target = $region17
  $region16: #{attention_up_block_forward.6} parent=0 // pred_region
    %vm215 = vcmask 3072
    %216 = vst.msk [vmem:[%s4] sm:$0xf] %vm215, 0.0
    %217 = vst.msk [vmem:[%s5] sm:$0xf] %vm215, 0.0
  $region17: #{attention_up_block_forward.6} parent=0 // pred_fallthru
    _
  %v218 = vld [vmem:[%s4] sm:$0xf]
  %vm219 = vcmask 1043456
  %v220 = vsel %vm219, %v207, 0.0
  %v221 = vsel %vm219, %v208, 0.0
  %v222 = vadd.f32 %v220, %v221
  %v223 = vsel %vm219, %v209, 0.0
  %v224 = vadd.f32 %v222, %v223
  %v225 = vsel %vm219, %v210, 0.0
  %v226 = vadd.f32 %v224, %v225
  %227 = vadd.xlane.f32.xlu0 %v226
  %v228 = vpop.xlane.xlu0 %227
  %v229 = vadd.f32 %v218, %v228
  %vm230 = vcmask 3072
  %231 = vst.msk [vmem:[%s4] sm:$0xf] %vm230, %v229
  %v232 = vld [vmem:[%s5] sm:$0xf]
  %v233 = vmul.f32 %v207, %v207
  %v234 = vmul.f32 %v208, %v208
  %v235 = vmul.f32 %v209, %v209
  %v236 = vmul.f32 %v210, %v210
  %v237 = vsel %vm219, %v233, 0.0
  %v238 = vsel %vm219, %v234, 0.0
  %v239 = vadd.f32 %v237, %v238
  %v240 = vsel %vm219, %v235, 0.0
  %v241 = vadd.f32 %v239, %v240
  %v242 = vsel %vm219, %v236, 0.0
  %v243 = vadd.f32 %v241, %v242
  %244 = vadd.xlane.f32.xlu0 %v243
  %v245 = vpop.xlane.xlu0 %244
  %v246 = vadd.f32 %v232, %v245
  %247 = vst.msk [vmem:[%s5] sm:$0xf] %vm230, %v246
  // Predicated region
  $region18: #{attention_up_block_forward.6} parent=0 // pred_check
    _
  $region19: #{attention_up_block_forward.6} parent=0 // pred_check_branch
    %249 = sbr.rel (0) target = $region21
  $region20: #{attention_up_block_forward.6} parent=0 // pred_region
    _
  $region21: #{attention_up_block_forward.6} parent=0 // pred_fallthru
    _
  // Predicated region
  $region22: #{attention_up_block_forward.6} parent=0 // pred_check
    _
  $region23: #{attention_up_block_forward.6} parent=0 // pred_check_branch
    %251 = sbr.rel (0) target = $region25
  $region24: #{attention_up_block_forward.6} parent=0 // pred_region
    _
  $region25: #{attention_up_block_forward.6} parent=0 // pred_fallthru
    _
  // Predicated region
  $region26: #{attention_up_block_forward.6} parent=0 // pred_check
    _
  $region27: #{attention_up_block_forward.6} parent=0 // pred_check_branch
    %253 = sbr.rel (0) target = $region29
  $region28: #{attention_up_block_forward.6} parent=0 // pred_region
    _
  $region29: #{attention_up_block_forward.6} parent=0 // pred_fallthru
    _
  // Predicated region
  $region30: #{attention_up_block_forward.6} parent=0 // pred_check
    _
  $region31: #{attention_up_block_forward.6} parent=0 // pred_check_branch
    %255 = sbr.rel (0) target = $region33
  $region32: #{attention_up_block_forward.6} parent=0 // pred_region
    _
  $region33: #{attention_up_block_forward.6} parent=0 // pred_fallthru
    _
  // Predicated region
  $region34: #{attention_up_block_forward.6} parent=0 // pred_check
    _
  $region35: #{attention_up_block_forward.6} parent=0 // pred_check_branch
    %257 = sbr.rel (0) target = $region37
  $region36: #{attention_up_block_forward.6} parent=0 // pred_region
    _
  $region37: #{attention_up_block_forward.6} parent=0 // pred_fallthru
    _
  // Predicated region
  $region38: #{attention_up_block_forward.6} parent=0 // pred_check
    _
  $region39: #{attention_up_block_forward.6} parent=0 // pred_check_branch
    %259 = sbr.rel (0) target = $region41
  $region40: #{attention_up_block_forward.6} parent=0 // pred_region
    _
  $region41: #{attention_up_block_forward.6} parent=0 // pred_fallthru
    _

// kernel: attention_up_block_forward.8
$region0: #{attention_up_block_forward.8}
  #allocation0 [shape = 'u32[]', space=smem, size = 0x4, offset = 0x4, fixed_abs, tag = 'smem constant byte address 0x4 - core index']
  #allocation1 [shape = 'u32[144,128]{1,0:T(1,128)}', space=vmem, size = 0x12000, scoped, tag = 'internal scratch']
  #allocation2 [shape = 'f32[1,1]{1,0:T(1,128)S(1)}', space=vmem, size = 0x200, scoped, tag = 'scoped memory for attention_up_block_forward.8']
  %s0 = inlined_call_operand.vmem [shape: f32[4,512], index: 0, kind: input, shape index: {}]
  %s1 = inlined_call_operand.vmem [shape: f32[4,512], index: 1, kind: input, shape index: {}]
  %s2 = inlined_call_operand.vmem [shape: f32[4,1], index: 2, kind: input, shape index: {}]
  %s3 = inlined_call_operand.vmem [shape: f32[4,1], index: 3, kind: input, shape index: {}]
  %s4 = inlined_call_operand.vmem [shape: f32[4,1], index: 4, kind: input, shape index: {}]
  %s5 = inlined_call_operand.vmem [shape: f32[4,1], index: 5, kind: input, shape index: {}]
  %s6 = inlined_call_operand.vmem [shape: f32[4,1], index: 6, kind: input, shape index: {}]
  %s7 = inlined_call_operand.<no memory space> [shape: f32[1,1], index: 7, kind: input, shape index: {}]
  %s8 = inlined_call_operand.vmem [shape: f32[1,512], index: 8, kind: output, shape index: {0}]
  %s9 = inlined_call_operand.hbm [shape: f32[1,1], index: 9, kind: output, shape index: {1}]
  %s10 = inlined_call_operand.hbm [shape: f32[1,1], index: 10, kind: output, shape index: {2}]
  %11 = xla_tuple %s8, %s9, %s10
  %s12 = sld [smem:[#allocation0]]
  $region62: #{attention_up_block_forward.8} parent=0
    _
  %s14 = ssub.s32 1, %s12
  %s15 = scalar_select 0, %s14, %s12
  %v16 = vstv %s7
  %17 = vst [vmem:[#allocation2] sm:$0x1] %v16
  $region1: #{attention_up_block_forward.8} parent=0
    #allocation3 [shape = 'u8[512]{0}', space=vmem, size = 0x400, scoped, tag = 'output window, operand 1, single buffered']
    #allocation4 [shape = 's32[1]{0}', space=sflag, size = 0x4, scoped, tag = 'scoped memory for attention_up_block_forward.8']
    #allocation5 [shape = 'u8[512]{0}', space=vmem, size = 0x400, scoped, tag = 'output window, operand 2, single buffered']
    #allocation6 [shape = 's32[1]{0}', space=sflag, size = 0x4, scoped, tag = 'scoped memory for attention_up_block_forward.8']
    %18 = vsyncpa [#allocation4], 0
    %19 = vsyncpa [#allocation6], 0
    // Predicated region
    $region2: #{attention_up_block_forward.8} parent=1 // pred_check
      _
    $region3: #{attention_up_block_forward.8} parent=1 // pred_check_branch
      %21 = sbr.rel (0) target = $region5
    $region4: #{attention_up_block_forward.8} parent=1 // pred_region
      _
    $region5: #{attention_up_block_forward.8} parent=1 // pred_fallthru
      _
    // Predicated region
    $region6: #{attention_up_block_forward.8} parent=1 // pred_check
      _
    $region7: #{attention_up_block_forward.8} parent=1 // pred_check_branch
      %23 = sbr.rel (0) target = $region9
    $region8: #{attention_up_block_forward.8} parent=1 // pred_region
      _
    $region9: #{attention_up_block_forward.8} parent=1 // pred_fallthru
      _
    // Predicated region
    $region10: #{attention_up_block_forward.8} parent=1 // pred_check
      _
    $region11: #{attention_up_block_forward.8} parent=1 // pred_check_branch
      %25 = sbr.rel (0) target = $region13
    $region12: #{attention_up_block_forward.8} parent=1 // pred_region
      _
    $region13: #{attention_up_block_forward.8} parent=1 // pred_fallthru
      _
    // Predicated region
    $region14: #{attention_up_block_forward.8} parent=1 // pred_check
      _
    $region15: #{attention_up_block_forward.8} parent=1 // pred_check_branch
      %27 = sbr.rel (0) target = $region17
    $region16: #{attention_up_block_forward.8} parent=1 // pred_region
      _
    $region17: #{attention_up_block_forward.8} parent=1 // pred_fallthru
      _
    // Predicated region
    $region18: #{attention_up_block_forward.8} parent=1 // pred_check
      _
    $region19: #{attention_up_block_forward.8} parent=1 // pred_check_branch
      %29 = sbr.rel (0) target = $region21
    $region20: #{attention_up_block_forward.8} parent=1 // pred_region
      _
    $region21: #{attention_up_block_forward.8} parent=1 // pred_fallthru
      _
    // Predicated region
    $region22: #{attention_up_block_forward.8} parent=1 // pred_check
      _
    $region23: #{attention_up_block_forward.8} parent=1 // pred_check_branch
      %31 = sbr.rel (0) target = $region25
    $region24: #{attention_up_block_forward.8} parent=1 // pred_region
      _
    $region25: #{attention_up_block_forward.8} parent=1 // pred_fallthru
      _
    // Predicated region
    $region26: #{attention_up_block_forward.8} parent=1 // pred_check
      _
    $region27: #{attention_up_block_forward.8} parent=1 // pred_check_branch
      %33 = sbr.rel (0) target = $region29
    $region28: #{attention_up_block_forward.8} parent=1 // pred_region
      _
    $region29: #{attention_up_block_forward.8} parent=1 // pred_fallthru
      _
    // Predicated region
    $region30: #{attention_up_block_forward.8} parent=1 // pred_check
      _
    $region31: #{attention_up_block_forward.8} parent=1 // pred_check_branch
      %35 = sbr.rel (0) target = $region33
    $region32: #{attention_up_block_forward.8} parent=1 // pred_region
      _
    $region33: #{attention_up_block_forward.8} parent=1 // pred_fallthru
      _
    %v36 = vld [vmem:[%s2] sm:$0xf]
    %v37 = vld [vmem:[%s0] sm:$0xff]
    %v38 = vld [vmem:[%s0 + $0x8] sm:$0xff]
    %40 = vset.pattern.permute.xlu0 0
    %41 = vperm.xlu0 %40, %v36
    %v42 = vpop.permute.xlu0 %41
    %v46 = vcombine.high %v37, %v37
    %v47 = vcombine.high %v38, %v38
    %v50 = vmul.f32 %v42, %v37
    %v51 = vmul.f32 %v42, %v46
    %v52 = vmul.f32 %v42, %v38
    %v53 = vmul.f32 %v42, %v47
    %v54 = vld [vmem:[%s3] sm:$0xf]
    %56 = vset.pattern.permute.xlu0 0
    %57 = vperm.xlu0 %56, %v54
    %v58 = vpop.permute.xlu0 %57
    %v60 = vadd.f32 %v50, %v58
    %v61 = vadd.f32 %v51, %v58
    %v62 = vadd.f32 %v52, %v58
    %v63 = vadd.f32 %v53, %v58
    %v64 = vld [vmem:[%s4] sm:$0xf]
    %v65 = vld [vmem:[%s1] sm:$0xff]
    %v66 = vld [vmem:[%s1 + $0x8] sm:$0xff]
    %68 = vset.pattern.permute.xlu0 0
    %69 = vperm.xlu0 %68, %v64
    %v70 = vpop.permute.xlu0 %69
    %v74 = vcombine.high %v65, %v65
    %v75 = vcombine.high %v66, %v66
    %v78 = vmul.f32 %v70, %v65
    %v79 = vmul.f32 %v70, %v74
    %v80 = vmul.f32 %v70, %v66
    %v81 = vmul.f32 %v70, %v75
    %v82 = vadd.f32 %v60, %v78
    %v83 = vadd.f32 %v61, %v79
    %v84 = vadd.f32 %v62, %v80
    %v85 = vadd.f32 %v63, %v81
    %v86 = vld [vmem:[%s5] sm:$0xf]
    %88 = vset.pattern.permute.xlu0 0
    %89 = vperm.xlu0 %88, %v86
    %v90 = vpop.permute.xlu0 %89
    %v92 = vadd.f32 %v82, %v90
    %v93 = vadd.f32 %v83, %v90
    %v94 = vadd.f32 %v84, %v90
    %v95 = vadd.f32 %v85, %v90
    %v96 = vmax.f32 %v92, 0.0
    %v97 = vmax.f32 %v93, 0.0
    %v98 = vmax.f32 %v94, 0.0
    %v99 = vmax.f32 %v95, 0.0
    %v100 = vld [vmem:[%s6] sm:$0xf]
    %102 = vset.pattern.permute.xlu0 0
    %103 = vperm.xlu0 %102, %v100
    %v104 = vpop.permute.xlu0 %103
    %v106 = vmul.f32 %v104, %v96
    %v107 = vmul.f32 %v104, %v97
    %v108 = vmul.f32 %v104, %v98
    %v109 = vmul.f32 %v104, %v99
    %vm110 = vcmask 1043456
    %v111 = vsel %vm110, %v106, 0.0
    %v112 = vrot.slane %v111, 4
    %v113 = vadd.f32 %v111, %v112
    %v114 = vrot.slane %v113, 2
    %v115 = vadd.f32 %v113, %v114
    %v116 = vrot.slane %v115, 1
    %v117 = vadd.f32 %v115, %v116
    %v118 = vsel %vm110, %v107, 0.0
    %v119 = vrot.slane %v118, 4
    %v120 = vadd.f32 %v118, %v119
    %v121 = vrot.slane %v120, 2
    %v122 = vadd.f32 %v120, %v121
    %v123 = vrot.slane %v122, 1
    %v124 = vadd.f32 %v122, %v123
    %v125 = vsel %vm110, %v108, 0.0
    %v126 = vrot.slane %v125, 4
    %v127 = vadd.f32 %v125, %v126
    %v128 = vrot.slane %v127, 2
    %v129 = vadd.f32 %v127, %v128
    %v130 = vrot.slane %v129, 1
    %v131 = vadd.f32 %v129, %v130
    %v132 = vsel %vm110, %v109, 0.0
    %v133 = vrot.slane %v132, 4
    %v134 = vadd.f32 %v132, %v133
    %v135 = vrot.slane %v134, 2
    %v136 = vadd.f32 %v134, %v135
    %v137 = vrot.slane %v136, 1
    %v138 = vadd.f32 %v136, %v137
    %v139 = vld [vmem:[#allocation2] sm:$0x1]
    %141 = vset.pattern.permute.xlu0 0
    %142 = vperm.xlu0 %141, %v139
    %v143 = vpop.permute.xlu0 %142
    %v145 = vlaneseq
    %v146 = vshrl.u32 %v145, 7
    %v147 = vsub.s32 0, %v146
    %v148 = vrot.slane %v143, %v147
    %v149 = vadd.f32 %v117, %v148
    %v150 = vadd.f32 %v124, %v148
    %v151 = vadd.f32 %v131, %v148
    %v152 = vadd.f32 %v138, %v148
    %v157 = vcombine.low %v149, %v150
    %v158 = vcombine.low %v151, %v152
    %v160 = vunpack.c.l.s4 1966171168
    %v161 = vunpack.c.0.s8 %v160
    %v162 = vlaneseq
    %v163 = vshrl.u32 %v162, 7
    %v164 = vsub.s32 %v161, %v163
    %v165 = vrot.slane %v157, %v164
    %v167 = vunpack.c.l.s4 1966171168
    %v168 = vunpack.c.0.s8 %v167
    %v169 = vlaneseq
    %v170 = vshrl.u32 %v169, 7
    %v171 = vsub.s32 %v168, %v170
    %v172 = vrot.slane %v158, %v171
    %v173 = vcombine.low %v165, %v172
    %v175 = vunpack.c.l.s4 1966171168
    %v176 = vunpack.c.0.s8 %v175
    %v177 = vlaneseq
    %v178 = vshrl.u32 %v177, 7
    %v179 = vsub.s32 %v176, %v178
    %v180 = vrot.slane %v173, %v179
    %v182 = vlaneseq
    %vm183 = vcmp.ge.s32.totalorder %v182, 0
    %vm184 = vcmp.lt.s32.totalorder %v182, 512
    %vm185 = vmand %vm183, %vm184
    %186 = vst.msk [vmem:[%s8] sm:$0xf] %vm185, %v180
    %s187 = smul.u32 0, 512
    %v188 = vlaneseq
    %v189 = vand.u32 %v188, 127
    %v190 = vadd.s32 %v189, 128
    %v191 = vadd.s32 %v189, 256
    %v192 = vadd.s32 %v189, 384
    %v193 = vstv %s187
    %v194 = vadd.s32 %v193, %v189
    %v195 = vadd.s32 %v193, %v190
    %v196 = vadd.s32 %v193, %v191
    %v197 = vadd.s32 %v193, %v192
    %vm198 = vcmp.lt.s32.totalorder %v194, 512
    %vm199 = vcmp.lt.s32.totalorder %v195, 512
    %vm200 = vcmp.lt.s32.totalorder %v196, 512
    %vm201 = vcmp.lt.s32.totalorder %v197, 512
    %v202 = vsel %vm198, %v149, 0.0
    %v203 = vsel %vm199, %v150, 0.0
    %v204 = vsel %vm200, %v151, 0.0
    %v205 = vsel %vm201, %v152, 0.0
    %p206 = scmp.eq.s32.totalorder 0, 0
    // Predicated region
    $region34: #{attention_up_block_forward.8} parent=1 // pred_check
      %p207 = pneg %p206
    $region35: #{attention_up_block_forward.8} parent=1 // pred_check_branch
      %209 = sbr.rel (%p207) target = $region37
    $region36: #{attention_up_block_forward.8} parent=1 // pred_region
      %vm210 = vcmask 0
      %211 = vst.msk [vmem:[#allocation3] sm:$0x1] %vm210, 0.0
      %212 = vst.msk [vmem:[#allocation5] sm:$0x1] %vm210, 0.0
    $region37: #{attention_up_block_forward.8} parent=1 // pred_fallthru
      _
    %v213 = vld [vmem:[#allocation3] sm:$0x1]
    %v214 = vadd.f32 %v202, %v203
    %v215 = vadd.f32 %v214, %v204
    %v216 = vadd.f32 %v215, %v205
    %217 = vadd.xlane.f32.xlu0 %v216
    %v218 = vpop.xlane.xlu0 %217
    %v219 = vadd.f32 %v213, %v218
    %vm220 = vcmask 0
    %221 = vst.msk [vmem:[#allocation3] sm:$0x1] %vm220, %v219
    %v222 = vld [vmem:[#allocation5] sm:$0x1]
    %v223 = vmul.f32 %v202, %v202
    %v224 = vmul.f32 %v203, %v203
    %v225 = vmul.f32 %v204, %v204
    %v226 = vmul.f32 %v205, %v205
    %v227 = vadd.f32 %v223, %v224
    %v228 = vadd.f32 %v227, %v225
    %v229 = vadd.f32 %v228, %v226
    %230 = vadd.xlane.f32.xlu0 %v229
    %v231 = vpop.xlane.xlu0 %230
    %v232 = vadd.f32 %v222, %v231
    %233 = vst.msk [vmem:[#allocation5] sm:$0x1] %vm220, %v232
    // Predicated region
    $region38: #{attention_up_block_forward.8} parent=1 // pred_check
      _
    $region39: #{attention_up_block_forward.8} parent=1 // pred_check_branch
      %235 = sbr.rel (0) target = $region41
    $region40: #{attention_up_block_forward.8} parent=1 // pred_region
      _
    $region41: #{attention_up_block_forward.8} parent=1 // pred_fallthru
      _
    // Predicated region
    $region42: #{attention_up_block_forward.8} parent=1 // pred_check
      _
    $region43: #{attention_up_block_forward.8} parent=1 // pred_check_branch
      %237 = sbr.rel (0) target = $region45
    $region44: #{attention_up_block_forward.8} parent=1 // pred_region
      %s239 = ssub.s32 16, 16
      %240 = vsyncadd [#allocation4], %s239
      %s242 = sshll.u32 [#allocation3], 4
      %s243 = int_to_ptr.vmem [resolvable:$true] %s242
      %245 = dma.vmem_to_hbm [thread:$0]  %s243, 16, %s9, [#allocation4]
    $region45: #{attention_up_block_forward.8} parent=1 // pred_fallthru
      _
    // Predicated region
    $region46: #{attention_up_block_forward.8} parent=1 // pred_check
      _
    $region47: #{attention_up_block_forward.8} parent=1 // pred_check_branch
      %247 = sbr.rel (0) target = $region49
    $region48: #{attention_up_block_forward.8} parent=1 // pred_region
      %s249 = ssub.s32 16, 16
      %250 = vsyncadd [#allocation6], %s249
      %s252 = sshll.u32 [#allocation5], 4
      %s253 = int_to_ptr.vmem [resolvable:$true] %s252
      %255 = dma.vmem_to_hbm [thread:$0]  %s253, 16, %s10, [#allocation6]
    $region49: #{attention_up_block_forward.8} parent=1 // pred_fallthru
      _
    // Predicated region
    $region50: #{attention_up_block_forward.8} parent=1 // pred_check
      _
    $region51: #{attention_up_block_forward.8} parent=1 // pred_check_branch
      %257 = sbr.rel (0) target = $region53
    $region52: #{attention_up_block_forward.8} parent=1 // pred_region
      _
    $region53: #{attention_up_block_forward.8} parent=1 // pred_fallthru
      _
    // Predicated region
    $region54: #{attention_up_block_forward.8} parent=1 // pred_check
      _
    $region55: #{attention_up_block_forward.8} parent=1 // pred_check_branch
      %259 = sbr.rel (0) target = $region57
    $region56: #{attention_up_block_forward.8} parent=1 // pred_region
      %260 = dma.done [#allocation4], 16
    $region57: #{attention_up_block_forward.8} parent=1 // pred_fallthru
      _
    // Predicated region
    $region58: #{attention_up_block_forward.8} parent=1 // pred_check
      _
    $region59: #{attention_up_block_forward.8} parent=1 // pred_check_branch
      %262 = sbr.rel (0) target = $region61
    $region60: #{attention_up_block_forward.8} parent=1 // pred_region
      %263 = dma.done [#allocation6], 16
    $region61: #{attention_up_block_forward.8} parent=1 // pred_fallthru
      _
    %264 = vsyncpa [#allocation4], 1
    %265 = vsyncpa [#allocation6], 1

// kernel: attention_up_block_forward.11
$region0: #{attention_up_block_forward.11}
  #allocation0 [shape = 'u32[]', space=smem, size = 0x4, offset = 0x4, fixed_abs, tag = 'smem constant byte address 0x4 - core index']
  #allocation1 [shape = 'u32[144,128]{1,0:T(1,128)}', space=vmem, size = 0x12000, scoped, tag = 'internal scratch']
  %s0 = inlined_call_operand.vmem [shape: f32[8,512], index: 0, kind: input, shape index: {}]
  %s1 = inlined_call_operand.vmem [shape: f32[8,1], index: 1, kind: input, shape index: {}]
  %s2 = inlined_call_operand.vmem [shape: f32[8,1], index: 2, kind: input, shape index: {}]
  %s3 = inlined_call_operand.vmem [shape: f32[8,512], index: 3, kind: output, shape index: {}]
  %s4 = sld [smem:[#allocation0]]
  $region22: #{attention_up_block_forward.11} parent=0
    _
  %s6 = ssub.s32 1, %s4
  %s7 = scalar_select 0, %s6, %s4
  // Predicated region
  $region2: #{attention_up_block_forward.11} parent=0 // pred_check
    _
  $region3: #{attention_up_block_forward.11} parent=0 // pred_check_branch
    %9 = sbr.rel (0) target = $region5
  $region4: #{attention_up_block_forward.11} parent=0 // pred_region
    _
  $region5: #{attention_up_block_forward.11} parent=0 // pred_fallthru
    _
  // Predicated region
  $region6: #{attention_up_block_forward.11} parent=0 // pred_check
    _
  $region7: #{attention_up_block_forward.11} parent=0 // pred_check_branch
    %11 = sbr.rel (0) target = $region9
  $region8: #{attention_up_block_forward.11} parent=0 // pred_region
    _
  $region9: #{attention_up_block_forward.11} parent=0 // pred_fallthru
    _
  // Predicated region
  $region10: #{attention_up_block_forward.11} parent=0 // pred_check
    _
  $region11: #{attention_up_block_forward.11} parent=0 // pred_check_branch
    %13 = sbr.rel (0) target = $region13
  $region12: #{attention_up_block_forward.11} parent=0 // pred_region
    _
  $region13: #{attention_up_block_forward.11} parent=0 // pred_fallthru
    _
  %v14 = vld [vmem:[%s1] sm:$0xff]
  %v15 = vld [vmem:[%s0] sm:$0xff]
  %v16 = vld [vmem:[%s0 + $0x8] sm:$0xff]
  %v17 = vld [vmem:[%s0 + $0x10] sm:$0xff]
  %v18 = vld [vmem:[%s0 + $0x18] sm:$0xff]
  %20 = vset.pattern.permute.xlu0 0
  %21 = vperm.xlu0 %20, %v14
  %v22 = vpop.permute.xlu0 %21
  %v24 = vmul.f32 %v22, %v15
  %v25 = vmul.f32 %v22, %v16
  %v26 = vmul.f32 %v22, %v17
  %v27 = vmul.f32 %v22, %v18
  %v28 = vld [vmem:[%s2] sm:$0xff]
  %30 = vset.pattern.permute.xlu0 0
  %31 = vperm.xlu0 %30, %v28
  %v32 = vpop.permute.xlu0 %31
  %v34 = vadd.f32 %v24, %v32
  %v35 = vadd.f32 %v25, %v32
  %v36 = vadd.f32 %v26, %v32
  %v37 = vadd.f32 %v27, %v32
  %38 = vst [vmem:[%s3] sm:$0xff] %v34
  %39 = vst [vmem:[%s3 + $0x8] sm:$0xff] %v35
  %40 = vst [vmem:[%s3 + $0x10] sm:$0xff] %v36
  %41 = vst [vmem:[%s3 + $0x18] sm:$0xff] %v37
  // Predicated region
  $region14: #{attention_up_block_forward.11} parent=0 // pred_check
    _
  $region15: #{attention_up_block_forward.11} parent=0 // pred_check_branch
    %43 = sbr.rel (0) target = $region17
  $region16: #{attention_up_block_forward.11} parent=0 // pred_region
    _
  $region17: #{attention_up_block_forward.11} parent=0 // pred_fallthru
    _
  // Predicated region
  $region18: #{attention_up_block_forward.11} parent=0 // pred_check
    _
  $region19: #{attention_up_block_forward.11} parent=0 // pred_check_branch
    %45 = sbr.rel (0) target = $region21
  $region20: #{attention_up_block_forward.11} parent=0 // pred_region
    _
  $region21: #{attention_up_block_forward.11} parent=0 // pred_fallthru
    _

// kernel: attention_up_block_forward.10
$region0: #{attention_up_block_forward.10}
  #allocation0 [shape = 'u32[]', space=smem, size = 0x4, offset = 0x4, fixed_abs, tag = 'smem constant byte address 0x4 - core index']
  #allocation1 [shape = 'u32[144,128]{1,0:T(1,128)}', space=vmem, size = 0x12000, scoped, tag = 'internal scratch']
  %s0 = inlined_call_operand.vmem [shape: f32[8,512], index: 0, kind: input, shape index: {}]
  %s1 = inlined_call_operand.vmem [shape: f32[8,8], index: 1, kind: input, shape index: {}]
  %s2 = inlined_call_operand.vmem [shape: f32[8,1], index: 2, kind: input, shape index: {}]
  %s3 = inlined_call_operand.vmem [shape: f32[8,512], index: 3, kind: output, shape index: {0}]
  %s4 = inlined_call_operand.vmem [shape: f32[8,1], index: 4, kind: output, shape index: {1}]
  %s5 = inlined_call_operand.vmem [shape: f32[8,1], index: 5, kind: output, shape index: {2}]
  %6 = xla_tuple %s3, %s4, %s5
  %s7 = sld [smem:[#allocation0]]
  $region42: #{attention_up_block_forward.10} parent=0
    _
  %s9 = ssub.s32 1, %s7
  %s10 = scalar_select 0, %s9, %s7
  // Predicated region
  $region2: #{attention_up_block_forward.10} parent=0 // pred_check
    _
  $region3: #{attention_up_block_forward.10} parent=0 // pred_check_branch
    %12 = sbr.rel (0) target = $region5
  $region4: #{attention_up_block_forward.10} parent=0 // pred_region
    _
  $region5: #{attention_up_block_forward.10} parent=0 // pred_fallthru
    _
  // Predicated region
  $region6: #{attention_up_block_forward.10} parent=0 // pred_check
    _
  $region7: #{attention_up_block_forward.10} parent=0 // pred_check_branch
    %14 = sbr.rel (0) target = $region9
  $region8: #{attention_up_block_forward.10} parent=0 // pred_region
    _
  $region9: #{attention_up_block_forward.10} parent=0 // pred_fallthru
    _
  // Predicated region
  $region10: #{attention_up_block_forward.10} parent=0 // pred_check
    _
  $region11: #{attention_up_block_forward.10} parent=0 // pred_check_branch
    %16 = sbr.rel (0) target = $region13
  $region12: #{attention_up_block_forward.10} parent=0 // pred_region
    _
  $region13: #{attention_up_block_forward.10} parent=0 // pred_fallthru
    _
  %v17 = vld [vmem:[%s1] sm:$0xff]
  %v18 = vld [vmem:[%s0] sm:$0xff]
  %v19 = vld [vmem:[%s0 + $0x8] sm:$0xff]
  %v20 = vld [vmem:[%s0 + $0x10] sm:$0xff]
  %v21 = vld [vmem:[%s0 + $0x18] sm:$0xff]
  %v22 = vld [vmem:[%s2] sm:$0xff]
  %24 = vset.pattern.permute.xlu0 0
  %25 = vperm.xlu0 %24, %v22
  %v26 = vpop.permute.xlu0 %25
  %vm28 = vcmask 64512
  %v30 = vsel %vm28, %v17, 0
  %32 = vmatprep.subr.mxu0 %v19
  %33 = vmatpush1.msra.mxu0 %v18
  %34 = vmatprep.subr.mxu0 0.0
  %35 = vmatpush1.msra.mxu0 0.0
  %36 = vmatprep.subr.mxu0 0.0
  %37 = vmatpush1.msra.mxu0 0.0
  %38 = vmatprep.subr.mxu0 0.0
  %39 = vmatpush1.msra.mxu0 0.0
  %40 = vmatprep.subr.mxu0 0.0
  %41 = vmatpush1.msra.mxu0 0.0
  %42 = vmatprep.subr.mxu0 0.0
  %43 = vmatpush1.msra.mxu0 0.0
  %44 = vmatprep.subr.mxu0 0.0
  %45 = vmatpush1.msra.mxu0 0.0
  %46 = vmatprep.subr.mxu0 0.0
  %47 = vmatpush1.msra.mxu0 0.0
  %48 = vmatprep.subr.mxu0 0.0
  %49 = vmatpush1.msra.mxu0 0.0
  %50 = vmatprep.subr.mxu0 0.0
  %51 = vmatpush1.msra.mxu0 0.0
  %52 = vmatprep.subr.mxu0 0.0
  %53 = vmatpush1.msra.mxu0 0.0
  %54 = vmatprep.subr.mxu0 0.0
  %55 = vmatpush1.msra.mxu0 0.0
  %56 = vmatprep.subr.mxu0 0.0
  %57 = vmatpush1.msra.mxu0 0.0
  %58 = vmatprep.subr.mxu0 0.0
  %59 = vmatpush1.msra.mxu0 0.0
  %60 = vmatprep.subr.mxu0 0.0
  %61 = vmatpush1.msra.mxu0 0.0
  %62 = vmatprep.subr.mxu0 0.0
  %63 = vmatpush1.msra.mxu0 0.0
  %64 = vmatprep.subr.mxu0 0.0
  %65 = vmatpush1.msra.mxu0 0.0
  %66 = vmatprep.subr.mxu0 0.0
  %67 = vmatpush1.msra.mxu0 0.0
  %68 = vmatprep.subr.mxu0 0.0
  %69 = vmatpush1.msra.mxu0 0.0
  %70 = vmatprep.subr.mxu0 0.0
  %71 = vmatpush1.msra.mxu0 0.0
  %72 = vmatprep.subr.mxu0 0.0
  %73 = vmatpush1.msra.mxu0 0.0
  %74 = vmatprep.subr.mxu0 0.0
  %75 = vmatpush1.msra.mxu0 0.0
  %76 = vmatprep.subr.mxu0 0.0
  %77 = vmatpush1.msra.mxu0 0.0
  %78 = vmatprep.subr.mxu0 0.0
  %79 = vmatpush1.msra.mxu0 0.0
  %80 = vmatprep.subr.mxu0 0.0
  %81 = vmatpush1.msra.mxu0 0.0
  %82 = vmatprep.subr.mxu0 0.0
  %83 = vmatpush1.msra.mxu0 0.0
  %84 = vmatprep.subr.mxu0 0.0
  %85 = vmatpush1.msra.mxu0 0.0
  %86 = vmatprep.subr.mxu0 0.0
  %87 = vmatpush1.msra.mxu0 0.0
  %88 = vmatprep.subr.mxu0 0.0
  %89 = vmatpush1.msra.mxu0 0.0
  %90 = vmatprep.subr.mxu0 0.0
  %91 = vmatpush1.msra.mxu0 0.0
  %92 = vmatprep.subr.mxu0 0.0
  %93 = vmatpush1.msra.mxu0 0.0
  %94 = vmatprep.subr.mxu0 0.0
  %95 = vmatpush1.msra.mxu0 0.0
  %96 = vmatprep.mubr.f32.mxu0 0.0
  %97 = vmatmul.mubr.f32.gmra.mrb[0].mxu0 %v30
  %v98 = vpop.f32.mrb[0].mxu0
  %v99 = vadd.f32 %v26, %v98
  %v100 = vpop.f32.mrb[0].mxu0
  %v101 = vadd.f32 %v26, %v100
  %102 = vdwg.mxu0
  %103 = vmatprep.subr.mxu0 %v21
  %104 = vmatpush1.msra.mxu0 %v20
  %105 = vmatprep.subr.mxu0 0.0
  %106 = vmatpush1.msra.mxu0 0.0
  %107 = vmatprep.subr.mxu0 0.0
  %108 = vmatpush1.msra.mxu0 0.0
  %109 = vmatprep.subr.mxu0 0.0
  %110 = vmatpush1.msra.mxu0 0.0
  %111 = vmatprep.subr.mxu0 0.0
  %112 = vmatpush1.msra.mxu0 0.0
  %113 = vmatprep.subr.mxu0 0.0
  %114 = vmatpush1.msra.mxu0 0.0
  %115 = vmatprep.subr.mxu0 0.0
  %116 = vmatpush1.msra.mxu0 0.0
  %117 = vmatprep.subr.mxu0 0.0
  %118 = vmatpush1.msra.mxu0 0.0
  %119 = vmatprep.subr.mxu0 0.0
  %120 = vmatpush1.msra.mxu0 0.0
  %121 = vmatprep.subr.mxu0 0.0
  %122 = vmatpush1.msra.mxu0 0.0
  %123 = vmatprep.subr.mxu0 0.0
  %124 = vmatpush1.msra.mxu0 0.0
  %125 = vmatprep.subr.mxu0 0.0
  %126 = vmatpush1.msra.mxu0 0.0
  %127 = vmatprep.subr.mxu0 0.0
  %128 = vmatpush1.msra.mxu0 0.0
  %129 = vmatprep.subr.mxu0 0.0
  %130 = vmatpush1.msra.mxu0 0.0
  %131 = vmatprep.subr.mxu0 0.0
  %132 = vmatpush1.msra.mxu0 0.0
  %133 = vmatprep.subr.mxu0 0.0
  %134 = vmatpush1.msra.mxu0 0.0
  %135 = vmatprep.subr.mxu0 0.0
  %136 = vmatpush1.msra.mxu0 0.0
  %137 = vmatprep.subr.mxu0 0.0
  %138 = vmatpush1.msra.mxu0 0.0
  %139 = vmatprep.subr.mxu0 0.0
  %140 = vmatpush1.msra.mxu0 0.0
  %141 = vmatprep.subr.mxu0 0.0
  %142 = vmatpush1.msra.mxu0 0.0
  %143 = vmatprep.subr.mxu0 0.0
  %144 = vmatpush1.msra.mxu0 0.0
  %145 = vmatprep.subr.mxu0 0.0
  %146 = vmatpush1.msra.mxu0 0.0
  %147 = vmatprep.subr.mxu0 0.0
  %148 = vmatpush1.msra.mxu0 0.0
  %149 = vmatprep.subr.mxu0 0.0
  %150 = vmatpush1.msra.mxu0 0.0
  %151 = vmatprep.subr.mxu0 0.0
  %152 = vmatpush1.msra.mxu0 0.0
  %153 = vmatprep.subr.mxu0 0.0
  %154 = vmatpush1.msra.mxu0 0.0
  %155 = vmatprep.subr.mxu0 0.0
  %156 = vmatpush1.msra.mxu0 0.0
  %157 = vmatprep.subr.mxu0 0.0
  %158 = vmatpush1.msra.mxu0 0.0
  %159 = vmatprep.subr.mxu0 0.0
  %160 = vmatpush1.msra.mxu0 0.0
  %161 = vmatprep.subr.mxu0 0.0
  %162 = vmatpush1.msra.mxu0 0.0
  %163 = vmatprep.subr.mxu0 0.0
  %164 = vmatpush1.msra.mxu0 0.0
  %165 = vmatprep.subr.mxu0 0.0
  %166 = vmatpush1.msra.mxu0 0.0
  %167 = vmatprep.mubr.f32.mxu0 0.0
  %168 = vmatmul.mubr.f32.gmra.mrb[0].mxu0 %v30
  %v169 = vpop.f32.mrb[0].mxu0
  %v170 = vadd.f32 %v26, %v169
  %v171 = vpop.f32.mrb[0].mxu0
  %v172 = vadd.f32 %v26, %v171
  %173 = vdwg.mxu0
  %174 = vst [vmem:[%s3] sm:$0xff] %v99
  %175 = vst [vmem:[%s3 + $0x8] sm:$0xff] %v101
  %176 = vst [vmem:[%s3 + $0x10] sm:$0xff] %v170
  %177 = vst [vmem:[%s3 + $0x18] sm:$0xff] %v172
  %s178 = smul.u32 0, 512
  %v179 = vlaneseq
  %v180 = vand.u32 %v179, 127
  %v181 = vadd.s32 %v180, 128
  %v182 = vadd.s32 %v180, 256
  %v183 = vadd.s32 %v180, 384
  %v184 = vstv %s178
  %v185 = vadd.s32 %v184, %v180
  %v186 = vadd.s32 %v184, %v181
  %v187 = vadd.s32 %v184, %v182
  %v188 = vadd.s32 %v184, %v183
  %vm189 = vcmp.lt.s32.totalorder %v185, 512
  %vm190 = vcmp.lt.s32.totalorder %v186, 512
  %vm191 = vcmp.lt.s32.totalorder %v187, 512
  %vm192 = vcmp.lt.s32.totalorder %v188, 512
  %v193 = vsel %vm189, 1, 0
  %v194 = vsel %vm190, 1, 0
  %v195 = vsel %vm191, 1, 0
  %v196 = vsel %vm192, 1, 0
  %vm197 = vcmp.eq.s32.totalorder %v193, 1
  %vm198 = vcmp.eq.s32.totalorder %v194, 1
  %vm199 = vcmp.eq.s32.totalorder %v195, 1
  %vm200 = vcmp.eq.s32.totalorder %v196, 1
  %v201 = vsel %vm197, %v99, 0.0
  %v202 = vsel %vm198, %v101, 0.0
  %v203 = vsel %vm199, %v170, 0.0
  %v204 = vsel %vm200, %v172, 0.0
  %p205 = scmp.eq.s32.totalorder 0, 0
  // Predicated region
  $region14: #{attention_up_block_forward.10} parent=0 // pred_check
    %p206 = pneg %p205
  $region15: #{attention_up_block_forward.10} parent=0 // pred_check_branch
    %208 = sbr.rel (%p206) target = $region17
  $region16: #{attention_up_block_forward.10} parent=0 // pred_region
    %vm209 = vcmask 7168
    %210 = vst.msk [vmem:[%s4] sm:$0xff] %vm209, 0.0
    %211 = vst.msk [vmem:[%s5] sm:$0xff] %vm209, 0.0
  $region17: #{attention_up_block_forward.10} parent=0 // pred_fallthru
    _
  %v212 = vld [vmem:[%s4] sm:$0xff]
  %v213 = vadd.f32 %v201, %v202
  %v214 = vadd.f32 %v213, %v203
  %v215 = vadd.f32 %v214, %v204
  %216 = vadd.xlane.f32.xlu0 %v215
  %v217 = vpop.xlane.xlu0 %216
  %v218 = vadd.f32 %v212, %v217
  %vm219 = vcmask 7168
  %220 = vst.msk [vmem:[%s4] sm:$0xff] %vm219, %v218
  %v221 = vld [vmem:[%s5] sm:$0xff]
  %v222 = vmul.f32 %v201, %v201
  %v223 = vmul.f32 %v202, %v202
  %v224 = vmul.f32 %v203, %v203
  %v225 = vmul.f32 %v204, %v204
  %v226 = vadd.f32 %v222, %v223
  %v227 = vadd.f32 %v226, %v224
  %v228 = vadd.f32 %v227, %v225
  %229 = vadd.xlane.f32.xlu0 %v228
  %v230 = vpop.xlane.xlu0 %229
  %v231 = vadd.f32 %v221, %v230
  %232 = vst.msk [vmem:[%s5] sm:$0xff] %vm219, %v231
  // Predicated region
  $region18: #{attention_up_block_forward.10} parent=0 // pred_check
    _
  $region19: #{attention_up_block_forward.10} parent=0 // pred_check_branch
    %234 = sbr.rel (0) target = $region21
  $region20: #{attention_up_block_forward.10} parent=0 // pred_region
    _
  $region21: #{attention_up_block_forward.10} parent=0 // pred_fallthru
    _
  // Predicated region
  $region22: #{attention_up_block_forward.10} parent=0 // pred_check
    _
  $region23: #{attention_up_block_forward.10} parent=0 // pred_check_branch
    %236 = sbr.rel (0) target = $region25
  $region24: #{attention_up_block_forward.10} parent=0 // pred_region
    _
  $region25: #{attention_up_block_forward.10} parent=0 // pred_fallthru
    _
  // Predicated region
  $region26: #{attention_up_block_forward.10} parent=0 // pred_check
    _
  $region27: #{attention_up_block_forward.10} parent=0 // pred_check_branch
    %238 = sbr.rel (0) target = $region29
  $region28: #{attention_up_block_forward.10} parent=0 // pred_region
    _
  $region29: #{attention_up_block_forward.10} parent=0 // pred_fallthru
    _
  // Predicated region
  $region30: #{attention_up_block_forward.10} parent=0 // pred_check
    _
  $region31: #{attention_up_block_forward.10} parent=0 // pred_check_branch
    %240 = sbr.rel (0) target = $region33
  $region32: #{attention_up_block_forward.10} parent=0 // pred_region
    _
  $region33: #{attention_up_block_forward.10} parent=0 // pred_fallthru
    _
  // Predicated region
  $region34: #{attention_up_block_forward.10} parent=0 // pred_check
    _
  $region35: #{attention_up_block_forward.10} parent=0 // pred_check_branch
    %242 = sbr.rel (0) target = $region37
  $region36: #{attention_up_block_forward.10} parent=0 // pred_region
    _
  $region37: #{attention_up_block_forward.10} parent=0 // pred_fallthru
    _
  // Predicated region
  $region38: #{attention_up_block_forward.10} parent=0 // pred_check
    _
  $region39: #{attention_up_block_forward.10} parent=0 // pred_check_branch
    %244 = sbr.rel (0) target = $region41
  $region40: #{attention_up_block_forward.10} parent=0 // pred_region
    _
  $region41: #{attention_up_block_forward.10} parent=0 // pred_fallthru
    _

// kernel: attention_up_block_forward.9
$region0: #{attention_up_block_forward.9}
  #allocation0 [shape = 'u32[]', space=smem, size = 0x4, offset = 0x4, fixed_abs, tag = 'smem constant byte address 0x4 - core index']
  #allocation1 [shape = 'u32[144,128]{1,0:T(1,128)}', space=vmem, size = 0x12000, scoped, tag = 'internal scratch']
  #allocation2 [shape = 'f32[1,1]{1,0:T(1,128)S(1)}', space=vmem, size = 0x200, scoped, tag = 'scoped memory for attention_up_block_forward.9']
  #allocation3 [shape = 'f32[1,1]{1,0:T(1,128)S(1)}', space=vmem, size = 0x200, scoped, tag = 'scoped memory for attention_up_block_forward.9']
  %s0 = inlined_call_operand.vmem [shape: f32[1,512], index: 0, kind: input, shape index: {}]
  %s1 = inlined_call_operand.<no memory space> [shape: f32[1,1], index: 1, kind: input, shape index: {}]
  %s2 = inlined_call_operand.<no memory space> [shape: f32[1,1], index: 2, kind: input, shape index: {}]
  %s3 = inlined_call_operand.vmem [shape: f32[8,512], index: 3, kind: input, shape index: {}]
  %s4 = inlined_call_operand.vmem [shape: f32[16,512], index: 4, kind: input, shape index: {}]
  %s5 = inlined_call_operand.vmem [shape: f32[8,8], index: 5, kind: input, shape index: {}]
  %s6 = inlined_call_operand.vmem [shape: f32[8,16], index: 6, kind: input, shape index: {}]
  %s7 = inlined_call_operand.vmem [shape: f32[8,1], index: 7, kind: input, shape index: {}]
  %s8 = inlined_call_operand.vmem [shape: f32[8,512], index: 8, kind: output, shape index: {0}]
  %s9 = inlined_call_operand.vmem [shape: f32[8,1], index: 9, kind: output, shape index: {1}]
  %s10 = inlined_call_operand.vmem [shape: f32[8,1], index: 10, kind: output, shape index: {2}]
  %11 = xla_tuple %s8, %s9, %s10
  %s12 = sld [smem:[#allocation0]]
  $region62: #{attention_up_block_forward.9} parent=0
    _
  %s14 = ssub.s32 1, %s12
  %s15 = scalar_select 0, %s14, %s12
  %v16 = vstv %s1
  %17 = vst [vmem:[#allocation2] sm:$0x1] %v16
  %v18 = vstv %s2
  %19 = vst [vmem:[#allocation3] sm:$0x1] %v18
  // Predicated region
  $region2: #{attention_up_block_forward.9} parent=0 // pred_check
    _
  $region3: #{attention_up_block_forward.9} parent=0 // pred_check_branch
    %21 = sbr.rel (0) target = $region5
  $region4: #{attention_up_block_forward.9} parent=0 // pred_region
    _
  $region5: #{attention_up_block_forward.9} parent=0 // pred_fallthru
    _
  // Predicated region
  $region6: #{attention_up_block_forward.9} parent=0 // pred_check
    _
  $region7: #{attention_up_block_forward.9} parent=0 // pred_check_branch
    %23 = sbr.rel (0) target = $region9
  $region8: #{attention_up_block_forward.9} parent=0 // pred_region
    _
  $region9: #{attention_up_block_forward.9} parent=0 // pred_fallthru
    _
  // Predicated region
  $region10: #{attention_up_block_forward.9} parent=0 // pred_check
    _
  $region11: #{attention_up_block_forward.9} parent=0 // pred_check_branch
    %25 = sbr.rel (0) target = $region13
  $region12: #{attention_up_block_forward.9} parent=0 // pred_region
    _
  $region13: #{attention_up_block_forward.9} parent=0 // pred_fallthru
    _
  // Predicated region
  $region14: #{attention_up_block_forward.9} parent=0 // pred_check
    _
  $region15: #{attention_up_block_forward.9} parent=0 // pred_check_branch
    %27 = sbr.rel (0) target = $region17
  $region16: #{attention_up_block_forward.9} parent=0 // pred_region
    _
  $region17: #{attention_up_block_forward.9} parent=0 // pred_fallthru
    _
  // Predicated region
  $region18: #{attention_up_block_forward.9} parent=0 // pred_check
    _
  $region19: #{attention_up_block_forward.9} parent=0 // pred_check_branch
    %29 = sbr.rel (0) target = $region21
  $region20: #{attention_up_block_forward.9} parent=0 // pred_region
    _
  $region21: #{attention_up_block_forward.9} parent=0 // pred_fallthru
    _
  // Predicated region
  $region22: #{attention_up_block_forward.9} parent=0 // pred_check
    _
  $region23: #{attention_up_block_forward.9} parent=0 // pred_check_branch
    %31 = sbr.rel (0) target = $region25
  $region24: #{attention_up_block_forward.9} parent=0 // pred_region
    _
  $region25: #{attention_up_block_forward.9} parent=0 // pred_fallthru
    _
  // Predicated region
  $region26: #{attention_up_block_forward.9} parent=0 // pred_check
    _
  $region27: #{attention_up_block_forward.9} parent=0 // pred_check_branch
    %33 = sbr.rel (0) target = $region29
  $region28: #{attention_up_block_forward.9} parent=0 // pred_region
    _
  $region29: #{attention_up_block_forward.9} parent=0 // pred_fallthru
    _
  // Predicated region
  $region30: #{attention_up_block_forward.9} parent=0 // pred_check
    _
  $region31: #{attention_up_block_forward.9} parent=0 // pred_check_branch
    %35 = sbr.rel (0) target = $region33
  $region32: #{attention_up_block_forward.9} parent=0 // pred_region
    _
  $region33: #{attention_up_block_forward.9} parent=0 // pred_fallthru
    _
  %v36 = vld [vmem:[#allocation2] sm:$0x1]
  %v37 = vld [vmem:[%s0] sm:$0xf]
  %39 = vset.pattern.permute.xlu0 0
  %40 = vperm.xlu0 %39, %v36
  %v41 = vpop.permute.xlu0 %40
  %v43 = vlaneseq
  %v44 = vshrl.u32 %v43, 7
  %v45 = vsub.s32 0, %v44
  %v46 = vrot.slane %v41, %v45
  %v47 = vmul.f32 %v46, %v37
  %v48 = vld [vmem:[#allocation3] sm:$0x1]
  %50 = vset.pattern.permute.xlu0 0
  %51 = vperm.xlu0 %50, %v48
  %v52 = vpop.permute.xlu0 %51
  %v54 = vlaneseq
  %v55 = vshrl.u32 %v54, 7
  %v56 = vsub.s32 0, %v55
  %v57 = vrot.slane %v52, %v56
  %v58 = vadd.f32 %v47, %v57
  %v59 = vxor.u32 %v58, 2147483648
  %v60 = vmul.f32 %v59, 1.442695
  %v61 = vpow.pop %v60
  %v62 = vadd.f32 %v61, 1.0
  %v63 = vrcp.pop %v62
  %v64 = vmul.f32 1.0, %v63
  %v65 = vxor.u32 %v64, 2147483648
  %v66 = vmul.f32 %v65, 1.442695
  %v67 = vpow.pop %v66
  %v68 = vadd.f32 %v67, 1.0
  %v69 = vrcp.pop %v68
  %v70 = vmul.f32 1.0, %v69
  %v71 = vld [vmem:[%s3] sm:$0xff]
  %v72 = vld [vmem:[%s3 + $0x8] sm:$0xff]
  %v73 = vld [vmem:[%s3 + $0x10] sm:$0xff]
  %v74 = vld [vmem:[%s3 + $0x18] sm:$0xff]
  %v76 = vlaneseq
  %v77 = vshrl.u32 %v76, 7
  %v78 = vsub.s32 0, %v77
  %v79 = vrot.slane %v70, %v78
  %v80 = vlaneseq
  %v81 = vshrl.u32 %v80, 7
  %v82 = vsub.s32 1, %v81
  %v83 = vrot.slane %v70, %v82
  %v84 = vlaneseq
  %v85 = vshrl.u32 %v84, 7
  %v86 = vsub.s32 2, %v85
  %v87 = vrot.slane %v70, %v86
  %v88 = vlaneseq
  %v89 = vshrl.u32 %v88, 7
  %v90 = vsub.s32 3, %v89
  %v91 = vrot.slane %v70, %v90
  %v96 = vmul.f32 %v79, %v71
  %v97 = vmul.f32 %v83, %v72
  %v98 = vmul.f32 %v87, %v73
  %v99 = vmul.f32 %v91, %v74
  %v100 = vld [vmem:[%s5] sm:$0xff]
  %v101 = vld [vmem:[%s6] sm:$0xff]
  %v102 = vld [vmem:[%s4] sm:$0xff]
  %v103 = vld [vmem:[%s4 + $0x8] sm:$0xff]
  %v104 = vld [vmem:[%s4 + $0x10] sm:$0xff]
  %v105 = vld [vmem:[%s4 + $0x18] sm:$0xff]
  %v106 = vld [vmem:[%s4 + $0x20] sm:$0xff]
  %v107 = vld [vmem:[%s4 + $0x28] sm:$0xff]
  %v108 = vld [vmem:[%s4 + $0x30] sm:$0xff]
  %v109 = vld [vmem:[%s4 + $0x38] sm:$0xff]
  %vm110 = vcmask 130048
  %v112 = vsel %vm110, %v101, 0
  %114 = vmatprep.subr.mxu0 %v103
  %115 = vmatpush1.msra.mxu0 %v102
  %116 = vmatprep.subr.mxu0 %v107
  %117 = vmatpush1.msra.mxu0 %v106
  %118 = vmatprep.subr.mxu0 0.0
  %119 = vmatpush1.msra.mxu0 0.0
  %120 = vmatprep.subr.mxu0 0.0
  %121 = vmatpush1.msra.mxu0 0.0
  %122 = vmatprep.subr.mxu0 0.0
  %123 = vmatpush1.msra.mxu0 0.0
  %124 = vmatprep.subr.mxu0 0.0
  %125 = vmatpush1.msra.mxu0 0.0
  %126 = vmatprep.subr.mxu0 0.0
  %127 = vmatpush1.msra.mxu0 0.0
  %128 = vmatprep.subr.mxu0 0.0
  %129 = vmatpush1.msra.mxu0 0.0
  %130 = vmatprep.subr.mxu0 0.0
  %131 = vmatpush1.msra.mxu0 0.0
  %132 = vmatprep.subr.mxu0 0.0
  %133 = vmatpush1.msra.mxu0 0.0
  %134 = vmatprep.subr.mxu0 0.0
  %135 = vmatpush1.msra.mxu0 0.0
  %136 = vmatprep.subr.mxu0 0.0
  %137 = vmatpush1.msra.mxu0 0.0
  %138 = vmatprep.subr.mxu0 0.0
  %139 = vmatpush1.msra.mxu0 0.0
  %140 = vmatprep.subr.mxu0 0.0
  %141 = vmatpush1.msra.mxu0 0.0
  %142 = vmatprep.subr.mxu0 0.0
  %143 = vmatpush1.msra.mxu0 0.0
  %144 = vmatprep.subr.mxu0 0.0
  %145 = vmatpush1.msra.mxu0 0.0
  %146 = vmatprep.subr.mxu0 0.0
  %147 = vmatpush1.msra.mxu0 0.0
  %148 = vmatprep.subr.mxu0 0.0
  %149 = vmatpush1.msra.mxu0 0.0
  %150 = vmatprep.subr.mxu0 0.0
  %151 = vmatpush1.msra.mxu0 0.0
  %152 = vmatprep.subr.mxu0 0.0
  %153 = vmatpush1.msra.mxu0 0.0
  %154 = vmatprep.subr.mxu0 0.0
  %155 = vmatpush1.msra.mxu0 0.0
  %156 = vmatprep.subr.mxu0 0.0
  %157 = vmatpush1.msra.mxu0 0.0
  %158 = vmatprep.subr.mxu0 0.0
  %159 = vmatpush1.msra.mxu0 0.0
  %160 = vmatprep.subr.mxu0 0.0
  %161 = vmatpush1.msra.mxu0 0.0
  %162 = vmatprep.subr.mxu0 0.0
  %163 = vmatpush1.msra.mxu0 0.0
  %164 = vmatprep.subr.mxu0 0.0
  %165 = vmatpush1.msra.mxu0 0.0
  %166 = vmatprep.subr.mxu0 0.0
  %167 = vmatpush1.msra.mxu0 0.0
  %168 = vmatprep.subr.mxu0 0.0
  %169 = vmatpush1.msra.mxu0 0.0
  %170 = vmatprep.subr.mxu0 0.0
  %171 = vmatpush1.msra.mxu0 0.0
  %172 = vmatprep.subr.mxu0 0.0
  %173 = vmatpush1.msra.mxu0 0.0
  %174 = vmatprep.subr.mxu0 0.0
  %175 = vmatpush1.msra.mxu0 0.0
  %176 = vmatprep.subr.mxu0 0.0
  %177 = vmatpush1.msra.mxu0 0.0
  %178 = vmatprep.mubr.f32.mxu0 0.0
  %179 = vmatmul.mubr.f32.gmra.mrb[0].mxu0 %v112
  %v180 = vpop.f32.mrb[0].mxu0
  %v181 = vadd.f32 0.0, %v180
  %v182 = vpop.f32.mrb[0].mxu0
  %v183 = vadd.f32 0.0, %v182
  %184 = vdwg.mxu0
  %185 = vmatprep.subr.mxu0 %v105
  %186 = vmatpush1.msra.mxu0 %v104
  %187 = vmatprep.subr.mxu0 %v109
  %188 = vmatpush1.msra.mxu0 %v108
  %189 = vmatprep.subr.mxu0 0.0
  %190 = vmatpush1.msra.mxu0 0.0
  %191 = vmatprep.subr.mxu0 0.0
  %192 = vmatpush1.msra.mxu0 0.0
  %193 = vmatprep.subr.mxu0 0.0
  %194 = vmatpush1.msra.mxu0 0.0
  %195 = vmatprep.subr.mxu0 0.0
  %196 = vmatpush1.msra.mxu0 0.0
  %197 = vmatprep.subr.mxu0 0.0
  %198 = vmatpush1.msra.mxu0 0.0
  %199 = vmatprep.subr.mxu0 0.0
  %200 = vmatpush1.msra.mxu0 0.0
  %201 = vmatprep.subr.mxu0 0.0
  %202 = vmatpush1.msra.mxu0 0.0
  %203 = vmatprep.subr.mxu0 0.0
  %204 = vmatpush1.msra.mxu0 0.0
  %205 = vmatprep.subr.mxu0 0.0
  %206 = vmatpush1.msra.mxu0 0.0
  %207 = vmatprep.subr.mxu0 0.0
  %208 = vmatpush1.msra.mxu0 0.0
  %209 = vmatprep.subr.mxu0 0.0
  %210 = vmatpush1.msra.mxu0 0.0
  %211 = vmatprep.subr.mxu0 0.0
  %212 = vmatpush1.msra.mxu0 0.0
  %213 = vmatprep.subr.mxu0 0.0
  %214 = vmatpush1.msra.mxu0 0.0
  %215 = vmatprep.subr.mxu0 0.0
  %216 = vmatpush1.msra.mxu0 0.0
  %217 = vmatprep.subr.mxu0 0.0
  %218 = vmatpush1.msra.mxu0 0.0
  %219 = vmatprep.subr.mxu0 0.0
  %220 = vmatpush1.msra.mxu0 0.0
  %221 = vmatprep.subr.mxu0 0.0
  %222 = vmatpush1.msra.mxu0 0.0
  %223 = vmatprep.subr.mxu0 0.0
  %224 = vmatpush1.msra.mxu0 0.0
  %225 = vmatprep.subr.mxu0 0.0
  %226 = vmatpush1.msra.mxu0 0.0
  %227 = vmatprep.subr.mxu0 0.0
  %228 = vmatpush1.msra.mxu0 0.0
  %229 = vmatprep.subr.mxu0 0.0
  %230 = vmatpush1.msra.mxu0 0.0
  %231 = vmatprep.subr.mxu0 0.0
  %232 = vmatpush1.msra.mxu0 0.0
  %233 = vmatprep.subr.mxu0 0.0
  %234 = vmatpush1.msra.mxu0 0.0
  %235 = vmatprep.subr.mxu0 0.0
  %236 = vmatpush1.msra.mxu0 0.0
  %237 = vmatprep.subr.mxu0 0.0
  %238 = vmatpush1.msra.mxu0 0.0
  %239 = vmatprep.subr.mxu0 0.0
  %240 = vmatpush1.msra.mxu0 0.0
  %241 = vmatprep.subr.mxu0 0.0
  %242 = vmatpush1.msra.mxu0 0.0
  %243 = vmatprep.subr.mxu0 0.0
  %244 = vmatpush1.msra.mxu0 0.0
  %245 = vmatprep.subr.mxu0 0.0
  %246 = vmatpush1.msra.mxu0 0.0
  %247 = vmatprep.subr.mxu0 0.0
  %248 = vmatpush1.msra.mxu0 0.0
  %249 = vmatprep.mubr.f32.mxu0 0.0
  %250 = vmatmul.mubr.f32.gmra.mrb[0].mxu0 %v112
  %v251 = vpop.f32.mrb[0].mxu0
  %v252 = vadd.f32 0.0, %v251
  %v253 = vpop.f32.mrb[0].mxu0
  %v254 = vadd.f32 0.0, %v253
  %255 = vdwg.mxu0
  %vm256 = vcmask 64512
  %v258 = vsel %vm256, %v100, 0
  %260 = vmatprep.subr.mxu0 %v97
  %261 = vmatpush1.msra.mxu0 %v96
  %262 = vmatprep.subr.mxu0 0.0
  %263 = vmatpush1.msra.mxu0 0.0
  %264 = vmatprep.subr.mxu0 0.0
  %265 = vmatpush1.msra.mxu0 0.0
  %266 = vmatprep.subr.mxu0 0.0
  %267 = vmatpush1.msra.mxu0 0.0
  %268 = vmatprep.subr.mxu0 0.0
  %269 = vmatpush1.msra.mxu0 0.0
  %270 = vmatprep.subr.mxu0 0.0
  %271 = vmatpush1.msra.mxu0 0.0
  %272 = vmatprep.subr.mxu0 0.0
  %273 = vmatpush1.msra.mxu0 0.0
  %274 = vmatprep.subr.mxu0 0.0
  %275 = vmatpush1.msra.mxu0 0.0
  %276 = vmatprep.subr.mxu0 0.0
  %277 = vmatpush1.msra.mxu0 0.0
  %278 = vmatprep.subr.mxu0 0.0
  %279 = vmatpush1.msra.mxu0 0.0
  %280 = vmatprep.subr.mxu0 0.0
  %281 = vmatpush1.msra.mxu0 0.0
  %282 = vmatprep.subr.mxu0 0.0
  %283 = vmatpush1.msra.mxu0 0.0
  %284 = vmatprep.subr.mxu0 0.0
  %285 = vmatpush1.msra.mxu0 0.0
  %286 = vmatprep.subr.mxu0 0.0
  %287 = vmatpush1.msra.mxu0 0.0
  %288 = vmatprep.subr.mxu0 0.0
  %289 = vmatpush1.msra.mxu0 0.0
  %290 = vmatprep.subr.mxu0 0.0
  %291 = vmatpush1.msra.mxu0 0.0
  %292 = vmatprep.subr.mxu0 0.0
  %293 = vmatpush1.msra.mxu0 0.0
  %294 = vmatprep.subr.mxu0 0.0
  %295 = vmatpush1.msra.mxu0 0.0
  %296 = vmatprep.subr.mxu0 0.0
  %297 = vmatpush1.msra.mxu0 0.0
  %298 = vmatprep.subr.mxu0 0.0
  %299 = vmatpush1.msra.mxu0 0.0
  %300 = vmatprep.subr.mxu0 0.0
  %301 = vmatpush1.msra.mxu0 0.0
  %302 = vmatprep.subr.mxu0 0.0
  %303 = vmatpush1.msra.mxu0 0.0
  %304 = vmatprep.subr.mxu0 0.0
  %305 = vmatpush1.msra.mxu0 0.0
  %306 = vmatprep.subr.mxu0 0.0
  %307 = vmatpush1.msra.mxu0 0.0
  %308 = vmatprep.subr.mxu0 0.0
  %309 = vmatpush1.msra.mxu0 0.0
  %310 = vmatprep.subr.mxu0 0.0
  %311 = vmatpush1.msra.mxu0 0.0
  %312 = vmatprep.subr.mxu0 0.0
  %313 = vmatpush1.msra.mxu0 0.0
  %314 = vmatprep.subr.mxu0 0.0
  %315 = vmatpush1.msra.mxu0 0.0
  %316 = vmatprep.subr.mxu0 0.0
  %317 = vmatpush1.msra.mxu0 0.0
  %318 = vmatprep.subr.mxu0 0.0
  %319 = vmatpush1.msra.mxu0 0.0
  %320 = vmatprep.subr.mxu0 0.0
  %321 = vmatpush1.msra.mxu0 0.0
  %322 = vmatprep.subr.mxu0 0.0
  %323 = vmatpush1.msra.mxu0 0.0
  %324 = vmatprep.mubr.f32.mxu0 0.0
  %325 = vmatmul.mubr.f32.gmra.mrb[0].mxu0 %v258
  %v326 = vpop.f32.mrb[0].mxu0
  %v327 = vadd.f32 %v181, %v326
  %v328 = vpop.f32.mrb[0].mxu0
  %v329 = vadd.f32 %v183, %v328
  %330 = vdwg.mxu0
  %331 = vmatprep.subr.mxu0 %v99
  %332 = vmatpush1.msra.mxu0 %v98
  %333 = vmatprep.subr.mxu0 0.0
  %334 = vmatpush1.msra.mxu0 0.0
  %335 = vmatprep.subr.mxu0 0.0
  %336 = vmatpush1.msra.mxu0 0.0
  %337 = vmatprep.subr.mxu0 0.0
  %338 = vmatpush1.msra.mxu0 0.0
  %339 = vmatprep.subr.mxu0 0.0
  %340 = vmatpush1.msra.mxu0 0.0
  %341 = vmatprep.subr.mxu0 0.0
  %342 = vmatpush1.msra.mxu0 0.0
  %343 = vmatprep.subr.mxu0 0.0
  %344 = vmatpush1.msra.mxu0 0.0
  %345 = vmatprep.subr.mxu0 0.0
  %346 = vmatpush1.msra.mxu0 0.0
  %347 = vmatprep.subr.mxu0 0.0
  %348 = vmatpush1.msra.mxu0 0.0
  %349 = vmatprep.subr.mxu0 0.0
  %350 = vmatpush1.msra.mxu0 0.0
  %351 = vmatprep.subr.mxu0 0.0
  %352 = vmatpush1.msra.mxu0 0.0
  %353 = vmatprep.subr.mxu0 0.0
  %354 = vmatpush1.msra.mxu0 0.0
  %355 = vmatprep.subr.mxu0 0.0
  %356 = vmatpush1.msra.mxu0 0.0
  %357 = vmatprep.subr.mxu0 0.0
  %358 = vmatpush1.msra.mxu0 0.0
  %359 = vmatprep.subr.mxu0 0.0
  %360 = vmatpush1.msra.mxu0 0.0
  %361 = vmatprep.subr.mxu0 0.0
  %362 = vmatpush1.msra.mxu0 0.0
  %363 = vmatprep.subr.mxu0 0.0
  %364 = vmatpush1.msra.mxu0 0.0
  %365 = vmatprep.subr.mxu0 0.0
  %366 = vmatpush1.msra.mxu0 0.0
  %367 = vmatprep.subr.mxu0 0.0
  %368 = vmatpush1.msra.mxu0 0.0
  %369 = vmatprep.subr.mxu0 0.0
  %370 = vmatpush1.msra.mxu0 0.0
  %371 = vmatprep.subr.mxu0 0.0
  %372 = vmatpush1.msra.mxu0 0.0
  %373 = vmatprep.subr.mxu0 0.0
  %374 = vmatpush1.msra.mxu0 0.0
  %375 = vmatprep.subr.mxu0 0.0
  %376 = vmatpush1.msra.mxu0 0.0
  %377 = vmatprep.subr.mxu0 0.0
  %378 = vmatpush1.msra.mxu0 0.0
  %379 = vmatprep.subr.mxu0 0.0
  %380 = vmatpush1.msra.mxu0 0.0
  %381 = vmatprep.subr.mxu0 0.0
  %382 = vmatpush1.msra.mxu0 0.0
  %383 = vmatprep.subr.mxu0 0.0
  %384 = vmatpush1.msra.mxu0 0.0
  %385 = vmatprep.subr.mxu0 0.0
  %386 = vmatpush1.msra.mxu0 0.0
  %387 = vmatprep.subr.mxu0 0.0
  %388 = vmatpush1.msra.mxu0 0.0
  %389 = vmatprep.subr.mxu0 0.0
  %390 = vmatpush1.msra.mxu0 0.0
  %391 = vmatprep.subr.mxu0 0.0
  %392 = vmatpush1.msra.mxu0 0.0
  %393 = vmatprep.subr.mxu0 0.0
  %394 = vmatpush1.msra.mxu0 0.0
  %395 = vmatprep.mubr.f32.mxu0 0.0
  %396 = vmatmul.mubr.f32.gmra.mrb[0].mxu0 %v258
  %v397 = vpop.f32.mrb[0].mxu0
  %v398 = vadd.f32 %v252, %v397
  %v399 = vpop.f32.mrb[0].mxu0
  %v400 = vadd.f32 %v254, %v399
  %401 = vdwg.mxu0
  %v402 = vld [vmem:[%s7] sm:$0xff]
  %404 = vset.pattern.permute.xlu0 0
  %405 = vperm.xlu0 %404, %v402
  %v406 = vpop.permute.xlu0 %405
  %v408 = vadd.f32 %v327, %v406
  %v409 = vadd.f32 %v329, %v406
  %v410 = vadd.f32 %v398, %v406
  %v411 = vadd.f32 %v400, %v406
  %412 = vst [vmem:[%s8] sm:$0xff] %v408
  %413 = vst [vmem:[%s8 + $0x8] sm:$0xff] %v409
  %414 = vst [vmem:[%s8 + $0x10] sm:$0xff] %v410
  %415 = vst [vmem:[%s8 + $0x18] sm:$0xff] %v411
  %s416 = smul.u32 0, 512
  %v417 = vlaneseq
  %v418 = vand.u32 %v417, 127
  %v419 = vadd.s32 %v418, 128
  %v420 = vadd.s32 %v418, 256
  %v421 = vadd.s32 %v418, 384
  %v422 = vstv %s416
  %v423 = vadd.s32 %v422, %v418
  %v424 = vadd.s32 %v422, %v419
  %v425 = vadd.s32 %v422, %v420
  %v426 = vadd.s32 %v422, %v421
  %vm427 = vcmp.lt.s32.totalorder %v423, 512
  %vm428 = vcmp.lt.s32.totalorder %v424, 512
  %vm429 = vcmp.lt.s32.totalorder %v425, 512
  %vm430 = vcmp.lt.s32.totalorder %v426, 512
  %v431 = vsel %vm427, 1, 0
  %v432 = vsel %vm428, 1, 0
  %v433 = vsel %vm429, 1, 0
  %v434 = vsel %vm430, 1, 0
  %vm435 = vcmp.eq.s32.totalorder %v431, 1
  %vm436 = vcmp.eq.s32.totalorder %v432, 1
  %vm437 = vcmp.eq.s32.totalorder %v433, 1
  %vm438 = vcmp.eq.s32.totalorder %v434, 1
  %v439 = vsel %vm435, %v408, 0.0
  %v440 = vsel %vm436, %v409, 0.0
  %v441 = vsel %vm437, %v410, 0.0
  %v442 = vsel %vm438, %v411, 0.0
  %p443 = scmp.eq.s32.totalorder 0, 0
  // Predicated region
  $region34: #{attention_up_block_forward.9} parent=0 // pred_check
    %p444 = pneg %p443
  $region35: #{attention_up_block_forward.9} parent=0 // pred_check_branch
    %446 = sbr.rel (%p444) target = $region37
  $region36: #{attention_up_block_forward.9} parent=0 // pred_region
    %vm447 = vcmask 7168
    %448 = vst.msk [vmem:[%s9] sm:$0xff] %vm447, 0.0
    %449 = vst.msk [vmem:[%s10] sm:$0xff] %vm447, 0.0
  $region37: #{attention_up_block_forward.9} parent=0 // pred_fallthru
    _
  %v450 = vld [vmem:[%s9] sm:$0xff]
  %v451 = vadd.f32 %v439, %v440
  %v452 = vadd.f32 %v451, %v441
  %v453 = vadd.f32 %v452, %v442
  %454 = vadd.xlane.f32.xlu0 %v453
  %v455 = vpop.xlane.xlu0 %454
  %v456 = vadd.f32 %v450, %v455
  %vm457 = vcmask 7168
  %458 = vst.msk [vmem:[%s9] sm:$0xff] %vm457, %v456
  %v459 = vld [vmem:[%s10] sm:$0xff]
  %v460 = vmul.f32 %v439, %v439
  %v461 = vmul.f32 %v440, %v440
  %v462 = vmul.f32 %v441, %v441
  %v463 = vmul.f32 %v442, %v442
  %v464 = vadd.f32 %v460, %v461
  %v465 = vadd.f32 %v464, %v462
  %v466 = vadd.f32 %v465, %v463
  %467 = vadd.xlane.f32.xlu0 %v466
  %v468 = vpop.xlane.xlu0 %467
  %v469 = vadd.f32 %v459, %v468
  %470 = vst.msk [vmem:[%s10] sm:$0xff] %vm457, %v469
  // Predicated region
  $region38: #{attention_up_block_forward.9} parent=0 // pred_check
    _
  $region39: #{attention_up_block_forward.9} parent=0 // pred_check_branch
    %472 = sbr.rel (0) target = $region41
  $region40: #{attention_up_block_forward.9} parent=0 // pred_region
    _
  $region41: #{attention_up_block_forward.9} parent=0 // pred_fallthru
    _
  // Predicated region
  $region42: #{attention_up_block_forward.9} parent=0 // pred_check
    _
  $region43: #{attention_up_block_forward.9} parent=0 // pred_check_branch
    %474 = sbr.rel (0) target = $region45
  $region44: #{attention_up_block_forward.9} parent=0 // pred_region
    _
  $region45: #{attention_up_block_forward.9} parent=0 // pred_fallthru
    _
  // Predicated region
  $region46: #{attention_up_block_forward.9} parent=0 // pred_check
    _
  $region47: #{attention_up_block_forward.9} parent=0 // pred_check_branch
    %476 = sbr.rel (0) target = $region49
  $region48: #{attention_up_block_forward.9} parent=0 // pred_region
    _
  $region49: #{attention_up_block_forward.9} parent=0 // pred_fallthru
    _
  // Predicated region
  $region50: #{attention_up_block_forward.9} parent=0 // pred_check
    _
  $region51: #{attention_up_block_forward.9} parent=0 // pred_check_branch
    %478 = sbr.rel (0) target = $region53
  $region52: #{attention_up_block_forward.9} parent=0 // pred_region
    _
  $region53: #{attention_up_block_forward.9} parent=0 // pred_fallthru
    _
  // Predicated region
  $region54: #{attention_up_block_forward.9} parent=0 // pred_check
    _
  $region55: #{attention_up_block_forward.9} parent=0 // pred_check_branch
    %480 = sbr.rel (0) target = $region57
  $region56: #{attention_up_block_forward.9} parent=0 // pred_region
    _
  $region57: #{attention_up_block_forward.9} parent=0 // pred_fallthru
    _
  // Predicated region
  $region58: #{attention_up_block_forward.9} parent=0 // pred_check
    _
  $region59: #{attention_up_block_forward.9} parent=0 // pred_check_branch
    %482 = sbr.rel (0) target = $region61
  $region60: #{attention_up_block_forward.9} parent=0 // pred_region
    _
  $region61: #{attention_up_block_forward.9} parent=0 // pred_fallthru
    _

</llo_original>
